<compile_context>
chip_gen: v7x
topology: tpu7x:2x2x1
jax: 0.10.0
libtpu: 0.0.40
codegen_flags: <defaults>
</compile_context>

<pallas_src>
import jax
import jax.numpy as jnp
from jax.experimental import pallas as pl
from jax.experimental.pallas import tpu as pltpu


def _round_up(n: int, m: int) -> int:
    return ((n + m - 1) // m) * m


def _vmem_physical_bytes() -> int:
    """Physical VMEM per TensorCore for the current generation."""
    try:
        kind = jax.devices()[0].device_kind.lower()
    except Exception:
        kind = ""
    if "v7" in kind:
        return 64 * 1024 * 1024
    # v5e / v6e (and a safe default): 128 MiB.
    return 128 * 1024 * 1024


def _pick_tile_b(B: int) -> int:
    """Batch tile: big enough to fill MXU rows, small enough to keep >=2 grid
    steps for the two v7x TensorCores when B allows; tiny B = one full tile."""
    if B >= 2048:
        return 512
    if B >= 512:
        return 256          # full 256-row MXU occupancy (v6e/v7x), >=2 steps
    if B >= 256:
        return 128          # keeps >=2 grid steps so both v7x TCs get work
    # Single full-batch tile, grid=(1,); 16 = native bf16 sublane pack.
    return _round_up(max(B, 16), 16)


def _pick_vmem_limit(tile_b, in_size, prepared, out_pad, out_itemsize,
                     weight_bufs):
    """Derive the VMEM budget from the actual resident footprint, capped per
    generation instead of a blanket constant."""
    need = 0
    max_width = out_pad
    for W_p, b_p in prepared:
        need += weight_bufs * (W_p.size * W_p.dtype.itemsize
                               + b_p.size * b_p.dtype.itemsize)
        max_width = max(max_width, W_p.shape[1])
    need += 2 * tile_b * in_size * 4             # double-buffered f32 x tiles
    need += 2 * tile_b * out_pad * out_itemsize  # double-buffered out tiles
    need += tile_b * max_width * (4 + 2)         # f32 accumulator + bf16 act
    need += 4 * 1024 * 1024                      # compiler/internal headroom
    physical = _vmem_physical_bytes()
    if physical <= (64 << 20):                   # v7x: leave room for scratch
        cap = physical - (12 << 20)              # ~52 MiB
    else:                                        # v5e / v6e
        cap = physical - (20 << 20)              # ~108 MiB
    # TODO(synk): if `need` exceeds `cap` (very large hidden sizes), switch to a
    # hidden-dim grid axis marked "arbitrary" with an f32 accumulator scratch
    # instead of fully-resident weights.
    return int(min(cap, max(32 << 20, need)))


def make_mlp_kernel(n_layers: int):
    """Kernel for an MLP with `n_layers` Linear layers (ReLU between them)."""

    def kernel(*refs):
        x_ref = refs[0]
        o_ref = refs[-1]
        wb_refs = refs[1:-1]  # (w0, b0, w1, b1, ...)

        # bf16 cast inside the kernel; the VPU cast hides under the matmuls.
        h = x_ref[...].astype(jnp.bfloat16)
        for i in range(n_layers):
            w = wb_refs[2 * i][...]        # bf16 (d_in, d_out_pad)
            b = wb_refs[2 * i + 1][...]    # f32  (1, d_out_pad)
            acc = jnp.dot(h, w, preferred_element_type=jnp.float32) + b
            if i < n_layers - 1:
                # ReLU in f32; Dropout is identity in eval mode.
                # TODO(synk): a training variant would mask here with
                # pltpu.prng_seed / pltpu.prng_random_bits.
                h = jnp.maximum(acc, 0.0).astype(jnp.bfloat16)
            else:
                o_ref[...] = acc.astype(o_ref.dtype)   # lane-dense store

    return kernel


def prepare_params(params):
    """One-time parameter prep (hoisted out of the forward path):
    pad output dims to multiples of 128, cast weights to bf16 (biases stay f32).
    The first layer's K dim is left un-padded: the kernel uses a full-last-dim
    block for x, so no feature padding of x is needed."""
    prepared = []
    for li, (W, b) in enumerate(params):
        d_in, d_out = W.shape
        d_out_pad = _round_up(d_out, 128)
        d_in_pad = d_in if li == 0 else _round_up(d_in, 128)
        W_p = jnp.pad(W, ((0, d_in_pad - d_in), (0, d_out_pad - d_out)))
        b_p = jnp.pad(jnp.reshape(b, (1, -1)), ((0, 0), (0, d_out_pad - d_out)))
        prepared.append((W_p.astype(jnp.bfloat16), b_p.astype(jnp.float32)))
    return prepared


def mlp_forward(x, prepared_params, *, out_size, tile_b=None,
                out_dtype=jnp.bfloat16):
    """x: (B, input_size) f32. prepared_params: output of prepare_params()."""
    B, in_size = x.shape
    n_layers = len(prepared_params)
    out_pad = prepared_params[-1][0].shape[1]
    assert prepared_params[0][0].shape[0] == in_size

    if tile_b is None:
        tile_b = _pick_tile_b(B)
    B_pad = _round_up(B, tile_b)
    # Only the batch dim ever needs padding; skip the pad entirely when aligned.
    x_p = x if B_pad == B else jnp.pad(x, ((0, B_pad - B), (0, 0)))

    grid = (B_pad // tile_b,)
    x_spec = pl.BlockSpec((tile_b, in_size), lambda i: (i, 0))
    out_spec = pl.BlockSpec((tile_b, out_pad), lambda i: (i, 0))

    flat_wb = []
    for W_p, b_p in prepared_params:
        flat_wb.extend([W_p, b_p])

    out_itemsize = jnp.dtype(out_dtype).itemsize

    def run(single_buffer_weights: bool):
        spec_kwargs = {}
        if single_buffer_weights:
            # Constant index_map -> nothing to pipeline: one buffer is enough.
            spec_kwargs["pipeline_mode"] = pl.Buffered(1)
        wb_specs = []
        for W_p, b_p in prepared_params:
            wb_specs.append(pl.BlockSpec(W_p.shape, lambda i: (0, 0),
                                         **spec_kwargs))
            wb_specs.append(pl.BlockSpec(b_p.shape, lambda i: (0, 0),
                                         **spec_kwargs))
        vmem_limit = _pick_vmem_limit(
            tile_b, in_size, prepared_params, out_pad, out_itemsize,
            weight_bufs=1 if single_buffer_weights else 2)
        return pl.pallas_call(
            make_mlp_kernel(n_layers),
            out_shape=jax.ShapeDtypeStruct((B_pad, out_pad), out_dtype),
            grid_spec=pltpu.PrefetchScalarGridSpec(
                num_scalar_prefetch=0,
                grid=grid,
                in_specs=[x_spec] + wb_specs,
                out_specs=out_spec,
            ),
            compiler_params=pltpu.CompilerParams(
                dimension_semantics=("parallel",),  # batch tiles across TCs
                vmem_limit_bytes=vmem_limit,
            ),
        )(x_p, *flat_wb)

    try:
        out_padded = run(True)
    except Exception:
        # Fallback for JAX versions where BlockSpec pipeline_mode=pl.Buffered(1)
        # is not supported for top-level pallas_call specs.
        out_padded = run(False)

    return out_padded[:B, :out_size]


def init_params(key, input_size, hidden_size, output_size, hidden_layer_num):
    """Deterministic synthetic init (PyTorch-style uniform). W stored as (in, out)."""
    dims = [input_size] + [hidden_size] * (hidden_layer_num + 1) + [output_size]
    params = []
    for i in range(len(dims) - 1):
        key, kw, kb = jax.random.split(key, 3)
        fan_in = dims[i]
        bound = 1.0 / jnp.sqrt(fan_in)
        W = jax.random.uniform(kw, (dims[i], dims[i + 1]),
                               minval=-bound, maxval=bound, dtype=jnp.float32)
        b = jax.random.uniform(kb, (1, dims[i + 1]),
                               minval=-bound, maxval=bound, dtype=jnp.float32)
        params.append((W, b))
    return params


def mlp_reference(x, params):
    """Reference matching kernel numerics: bf16 matmul inputs, f32 accumulation."""
    h = x
    n = len(params)
    for i, (W, b) in enumerate(params):
        hb = h.astype(jnp.bfloat16).astype(jnp.float32)
        Wb = W.astype(jnp.bfloat16).astype(jnp.float32)
        h = hb @ Wb + b
        if i < n - 1:
            h = jnp.maximum(h, 0.0)
    return h


if __name__ == "__main__":
    # MLP(input_size=32, output_size=16, hidden_size=128, hidden_layer_num=2)
    # -> 4 Linear layers.  batch=64: tile_b defaults to the full batch (64,
    # rounded to the bf16 pack of 16), so the grid is (1,) with one MXU-dense
    # pass per layer (per performance review).
    INPUT_SIZE, HIDDEN_SIZE, OUTPUT_SIZE, HIDDEN_LAYER_NUM = 32, 128, 16, 2
    BATCH = 64

    key = jax.random.PRNGKey(0)
    key, kx = jax.random.split(key)
    x = jax.random.normal(kx, (BATCH, INPUT_SIZE), dtype=jnp.float32)
    params = init_params(key, INPUT_SIZE, HIDDEN_SIZE, OUTPUT_SIZE,
                         HIDDEN_LAYER_NUM)

    prepared = prepare_params(params)     # one-time pad + bf16 cast (hoisted)
    out = mlp_forward(x, prepared, out_size=OUTPUT_SIZE)
    out = jax.block_until_ready(out)

    ref = mlp_reference(x, params)
    assert out.shape == (BATCH, OUTPUT_SIZE), out.shape
    # Output is emitted in bf16 (halves the padded writeback); compare in f32
    # with bf16-level tolerance.
    assert jnp.allclose(out.astype(jnp.float32), ref, atol=1e-2, rtol=1e-2), \
        "mismatch vs reference"

    print("KERNEL_OK")
</pallas_src>

<mosaic_0001>
module attributes {stable_mosaic.version = 11 : i64} {
  func.func @kernel(%arg0: i32, %arg1: memref<64x32xf32, #tpu.memory_space<vmem>>, %arg2: memref<32x128xbf16, #tpu.memory_space<vmem>>, %arg3: memref<1x128xf32, #tpu.memory_space<vmem>>, %arg4: memref<128x128xbf16, #tpu.memory_space<vmem>>, %arg5: memref<1x128xf32, #tpu.memory_space<vmem>>, %arg6: memref<128x128xbf16, #tpu.memory_space<vmem>>, %arg7: memref<1x128xf32, #tpu.memory_space<vmem>>, %arg8: memref<128x128xbf16, #tpu.memory_space<vmem>>, %arg9: memref<1x128xf32, #tpu.memory_space<vmem>>, %arg10: memref<64x128xbf16, #tpu.memory_space<vmem>>) attributes {dimension_semantics = [#tpu.dimension_semantics<parallel>], iteration_bounds = array<i64: 1>, scalar_prefetch = 0 : i64, scratch_operands = 0 : i64, tpu.core_type = #tpu.core_type<tc>, window_params = [{transform_indices = @transform_0, window_bounds = array<i64: 64, 32>}, {pipeline_mode = #tpu.pipeline_mode<synchronous>, transform_indices = @transform_1, window_bounds = array<i64: 32, 128>}, {pipeline_mode = #tpu.pipeline_mode<synchronous>, transform_indices = @transform_2, window_bounds = array<i64: 1, 128>}, {pipeline_mode = #tpu.pipeline_mode<synchronous>, transform_indices = @transform_3, window_bounds = array<i64: 128, 128>}, {pipeline_mode = #tpu.pipeline_mode<synchronous>, transform_indices = @transform_4, window_bounds = array<i64: 1, 128>}, {pipeline_mode = #tpu.pipeline_mode<synchronous>, transform_indices = @transform_5, window_bounds = array<i64: 128, 128>}, {pipeline_mode = #tpu.pipeline_mode<synchronous>, transform_indices = @transform_6, window_bounds = array<i64: 1, 128>}, {pipeline_mode = #tpu.pipeline_mode<synchronous>, transform_indices = @transform_7, window_bounds = array<i64: 128, 128>}, {pipeline_mode = #tpu.pipeline_mode<synchronous>, transform_indices = @transform_8, window_bounds = array<i64: 1, 128>}, {transform_indices = @transform_9, window_bounds = array<i64: 64, 128>}]} {
    %c0 = arith.constant 0 : index
    %c0_0 = arith.constant 0 : index
    %0 = vector.load %arg1[%c0, %c0_0] : memref<64x32xf32, #tpu.memory_space<vmem>>, vector<64x32xf32>
    %1 = arith.truncf %0 : vector<64x32xf32> to vector<64x32xbf16>
    %c0_1 = arith.constant 0 : index
    %c0_2 = arith.constant 0 : index
    %2 = vector.load %arg2[%c0_1, %c0_2] : memref<32x128xbf16, #tpu.memory_space<vmem>>, vector<32x128xbf16>
    %c0_3 = arith.constant 0 : index
    %c0_4 = arith.constant 0 : index
    %3 = vector.load %arg3[%c0_3, %c0_4] : memref<1x128xf32, #tpu.memory_space<vmem>>, vector<1x128xf32>
    %cst = arith.constant dense<0.000000e+00> : vector<64x128xf32>
    %4 = tpu.matmul %1, %2, %cst {dimension_numbers = #tpu.dot_dimension_numbers<[1], [0], [0], [1], [0, 0, 1, 1], [], []>} : vector<64x32xbf16>, vector<32x128xbf16>, vector<64x128xf32> -> vector<64x128xf32>
    %5 = vector.broadcast %3 : vector<1x128xf32> to vector<64x128xf32>
    %6 = arith.addf %4, %5 : vector<64x128xf32>
    %cst_5 = arith.constant 0.000000e+00 : f32
    %7 = vector.broadcast %cst_5 : f32 to vector<64x128xf32>
    %8 = arith.maximumf %6, %7 : vector<64x128xf32>
    %9 = arith.truncf %8 : vector<64x128xf32> to vector<64x128xbf16>
    %c0_6 = arith.constant 0 : index
    %c0_7 = arith.constant 0 : index
    %10 = vector.load %arg4[%c0_6, %c0_7] : memref<128x128xbf16, #tpu.memory_space<vmem>>, vector<128x128xbf16>
    %c0_8 = arith.constant 0 : index
    %c0_9 = arith.constant 0 : index
    %11 = vector.load %arg5[%c0_8, %c0_9] : memref<1x128xf32, #tpu.memory_space<vmem>>, vector<1x128xf32>
    %cst_10 = arith.constant dense<0.000000e+00> : vector<64x128xf32>
    %12 = tpu.matmul %9, %10, %cst_10 {dimension_numbers = #tpu.dot_dimension_numbers<[1], [0], [0], [1], [0, 0, 1, 1], [], []>} : vector<64x128xbf16>, vector<128x128xbf16>, vector<64x128xf32> -> vector<64x128xf32>
    %13 = vector.broadcast %11 : vector<1x128xf32> to vector<64x128xf32>
    %14 = arith.addf %12, %13 : vector<64x128xf32>
    %cst_11 = arith.constant 0.000000e+00 : f32
    %15 = vector.broadcast %cst_11 : f32 to vector<64x128xf32>
    %16 = arith.maximumf %14, %15 : vector<64x128xf32>
    %17 = arith.truncf %16 : vector<64x128xf32> to vector<64x128xbf16>
    %c0_12 = arith.constant 0 : index
    %c0_13 = arith.constant 0 : index
    %18 = vector.load %arg6[%c0_12, %c0_13] : memref<128x128xbf16, #tpu.memory_space<vmem>>, vector<128x128xbf16>
    %c0_14 = arith.constant 0 : index
    %c0_15 = arith.constant 0 : index
    %19 = vector.load %arg7[%c0_14, %c0_15] : memref<1x128xf32, #tpu.memory_space<vmem>>, vector<1x128xf32>
    %cst_16 = arith.constant dense<0.000000e+00> : vector<64x128xf32>
    %20 = tpu.matmul %17, %18, %cst_16 {dimension_numbers = #tpu.dot_dimension_numbers<[1], [0], [0], [1], [0, 0, 1, 1], [], []>} : vector<64x128xbf16>, vector<128x128xbf16>, vector<64x128xf32> -> vector<64x128xf32>
    %21 = vector.broadcast %19 : vector<1x128xf32> to vector<64x128xf32>
    %22 = arith.addf %20, %21 : vector<64x128xf32>
    %cst_17 = arith.constant 0.000000e+00 : f32
    %23 = vector.broadcast %cst_17 : f32 to vector<64x128xf32>
    %24 = arith.maximumf %22, %23 : vector<64x128xf32>
    %25 = arith.truncf %24 : vector<64x128xf32> to vector<64x128xbf16>
    %c0_18 = arith.constant 0 : index
    %c0_19 = arith.constant 0 : index
    %26 = vector.load %arg8[%c0_18, %c0_19] : memref<128x128xbf16, #tpu.memory_space<vmem>>, vector<128x128xbf16>
    %c0_20 = arith.constant 0 : index
    %c0_21 = arith.constant 0 : index
    %27 = vector.load %arg9[%c0_20, %c0_21] : memref<1x128xf32, #tpu.memory_space<vmem>>, vector<1x128xf32>
    %cst_22 = arith.constant dense<0.000000e+00> : vector<64x128xf32>
    %28 = tpu.matmul %25, %26, %cst_22 {dimension_numbers = #tpu.dot_dimension_numbers<[1], [0], [0], [1], [0, 0, 1, 1], [], []>} : vector<64x128xbf16>, vector<128x128xbf16>, vector<64x128xf32> -> vector<64x128xf32>
    %29 = vector.broadcast %27 : vector<1x128xf32> to vector<64x128xf32>
    %30 = arith.addf %28, %29 : vector<64x128xf32>
    %31 = arith.truncf %30 : vector<64x128xf32> to vector<64x128xbf16>
    %c0_23 = arith.constant 0 : index
    %c0_24 = arith.constant 0 : index
    %32 = vector.load %arg10[%c0_23, %c0_24] : memref<64x128xbf16, #tpu.memory_space<vmem>>, vector<64x128xbf16>
    tpu.vector_store %arg10[%c0_23, %c0_24], %31 {strides = array<i32>} : memref<64x128xbf16, #tpu.memory_space<vmem>>, vector<64x128xbf16>,
    return
  }
  func.func @transform_0(%arg0: i32) -> (i32, i32) {
    %c0_i32 = arith.constant 0 : i32
    %c0_i32_0 = arith.constant 0 : i32
    return %arg0, %c0_i32 : i32, i32
  }
  func.func @transform_1(%arg0: i32) -> (i32, i32) {
    %c0_i32 = arith.constant 0 : i32
    %c0_i32_0 = arith.constant 0 : i32
    %c0_i32_1 = arith.constant 0 : i32
    return %c0_i32, %c0_i32_0 : i32, i32
  }
  func.func @transform_2(%arg0: i32) -> (i32, i32) {
    %c0_i32 = arith.constant 0 : i32
    %c0_i32_0 = arith.constant 0 : i32
    %c0_i32_1 = arith.constant 0 : i32
    return %c0_i32, %c0_i32_0 : i32, i32
  }
  func.func @transform_3(%arg0: i32) -> (i32, i32) {
    %c0_i32 = arith.constant 0 : i32
    %c0_i32_0 = arith.constant 0 : i32
    %c0_i32_1 = arith.constant 0 : i32
    return %c0_i32, %c0_i32_0 : i32, i32
  }
  func.func @transform_4(%arg0: i32) -> (i32, i32) {
    %c0_i32 = arith.constant 0 : i32
    %c0_i32_0 = arith.constant 0 : i32
    %c0_i32_1 = arith.constant 0 : i32
    return %c0_i32, %c0_i32_0 : i32, i32
  }
  func.func @transform_5(%arg0: i32) -> (i32, i32) {
    %c0_i32 = arith.constant 0 : i32
    %c0_i32_0 = arith.constant 0 : i32
    %c0_i32_1 = arith.constant 0 : i32
    return %c0_i32, %c0_i32_0 : i32, i32
  }
  func.func @transform_6(%arg0: i32) -> (i32, i32) {
    %c0_i32 = arith.constant 0 : i32
    %c0_i32_0 = arith.constant 0 : i32
    %c0_i32_1 = arith.constant 0 : i32
    return %c0_i32, %c0_i32_0 : i32, i32
  }
  func.func @transform_7(%arg0: i32) -> (i32, i32) {
    %c0_i32 = arith.constant 0 : i32
    %c0_i32_0 = arith.constant 0 : i32
    %c0_i32_1 = arith.constant 0 : i32
    return %c0_i32, %c0_i32_0 : i32, i32
  }
  func.func @transform_8(%arg0: i32) -> (i32, i32) {
    %c0_i32 = arith.constant 0 : i32
    %c0_i32_0 = arith.constant 0 : i32
    %c0_i32_1 = arith.constant 0 : i32
    return %c0_i32, %c0_i32_0 : i32, i32
  }
  func.func @transform_9(%arg0: i32) -> (i32, i32) {
    %c0_i32 = arith.constant 0 : i32
    %c0_i32_0 = arith.constant 0 : i32
    return %arg0, %c0_i32 : i32, i32
  }
}

module attributes {stable_mosaic.version = 11 : i64} {
  func.func @kernel(%arg0: i32, %arg1: memref<64x32xf32, #tpu.memory_space<vmem>>, %arg2: memref<32x128xbf16, #tpu.memory_space<vmem>>, %arg3: memref<1x128xf32, #tpu.memory_space<vmem>>, %arg4: memref<128x128xbf16, #tpu.memory_space<vmem>>, %arg5: memref<1x128xf32, #tpu.memory_space<vmem>>, %arg6: memref<128x128xbf16, #tpu.memory_space<vmem>>, %arg7: memref<1x128xf32, #tpu.memory_space<vmem>>, %arg8: memref<128x128xbf16, #tpu.memory_space<vmem>>, %arg9: memref<1x128xf32, #tpu.memory_space<vmem>>, %arg10: memref<64x128xbf16, #tpu.memory_space<vmem>>) attributes {dimension_semantics = [#tpu.dimension_semantics<parallel>], iteration_bounds = array<i64: 1>, scalar_prefetch = 0 : i64, scratch_operands = 0 : i64, tpu.core_type = #tpu.core_type<tc>, window_params = [{transform_indices = @transform_0, window_bounds = array<i64: 64, 32>}, {pipeline_mode = #tpu.pipeline_mode<synchronous>, transform_indices = @transform_1, window_bounds = array<i64: 32, 128>}, {pipeline_mode = #tpu.pipeline_mode<synchronous>, transform_indices = @transform_2, window_bounds = array<i64: 1, 128>}, {pipeline_mode = #tpu.pipeline_mode<synchronous>, transform_indices = @transform_3, window_bounds = array<i64: 128, 128>}, {pipeline_mode = #tpu.pipeline_mode<synchronous>, transform_indices = @transform_4, window_bounds = array<i64: 1, 128>}, {pipeline_mode = #tpu.pipeline_mode<synchronous>, transform_indices = @transform_5, window_bounds = array<i64: 128, 128>}, {pipeline_mode = #tpu.pipeline_mode<synchronous>, transform_indices = @transform_6, window_bounds = array<i64: 1, 128>}, {pipeline_mode = #tpu.pipeline_mode<synchronous>, transform_indices = @transform_7, window_bounds = array<i64: 128, 128>}, {pipeline_mode = #tpu.pipeline_mode<synchronous>, transform_indices = @transform_8, window_bounds = array<i64: 1, 128>}, {transform_indices = @transform_9, window_bounds = array<i64: 64, 128>}]} {
    %c0 = arith.constant 0 : index
    %c0_0 = arith.constant 0 : index
    %0 = vector.load %arg1[%c0, %c0_0] : memref<64x32xf32, #tpu.memory_space<vmem>>, vector<64x32xf32>
    %1 = arith.truncf %0 : vector<64x32xf32> to vector<64x32xbf16>
    %c0_1 = arith.constant 0 : index
    %c0_2 = arith.constant 0 : index
    %2 = vector.load %arg2[%c0_1, %c0_2] : memref<32x128xbf16, #tpu.memory_space<vmem>>, vector<32x128xbf16>
    %c0_3 = arith.constant 0 : index
    %c0_4 = arith.constant 0 : index
    %3 = vector.load %arg3[%c0_3, %c0_4] : memref<1x128xf32, #tpu.memory_space<vmem>>, vector<1x128xf32>
    %cst = arith.constant dense<0.000000e+00> : vector<64x128xf32>
    %4 = tpu.matmul %1, %2, %cst {dimension_numbers = #tpu.dot_dimension_numbers<[1], [0], [0], [1], [0, 0, 1, 1], [], []>} : vector<64x32xbf16>, vector<32x128xbf16>, vector<64x128xf32> -> vector<64x128xf32>
    %5 = vector.broadcast %3 : vector<1x128xf32> to vector<64x128xf32>
    %6 = arith.addf %4, %5 : vector<64x128xf32>
    %cst_5 = arith.constant 0.000000e+00 : f32
    %7 = vector.broadcast %cst_5 : f32 to vector<64x128xf32>
    %8 = arith.maximumf %6, %7 : vector<64x128xf32>
    %9 = arith.truncf %8 : vector<64x128xf32> to vector<64x128xbf16>
    %c0_6 = arith.constant 0 : index
    %c0_7 = arith.constant 0 : index
    %10 = vector.load %arg4[%c0_6, %c0_7] : memref<128x128xbf16, #tpu.memory_space<vmem>>, vector<128x128xbf16>
    %c0_8 = arith.constant 0 : index
    %c0_9 = arith.constant 0 : index
    %11 = vector.load %arg5[%c0_8, %c0_9] : memref<1x128xf32, #tpu.memory_space<vmem>>, vector<1x128xf32>
    %cst_10 = arith.constant dense<0.000000e+00> : vector<64x128xf32>
    %12 = tpu.matmul %9, %10, %cst_10 {dimension_numbers = #tpu.dot_dimension_numbers<[1], [0], [0], [1], [0, 0, 1, 1], [], []>} : vector<64x128xbf16>, vector<128x128xbf16>, vector<64x128xf32> -> vector<64x128xf32>
    %13 = vector.broadcast %11 : vector<1x128xf32> to vector<64x128xf32>
    %14 = arith.addf %12, %13 : vector<64x128xf32>
    %cst_11 = arith.constant 0.000000e+00 : f32
    %15 = vector.broadcast %cst_11 : f32 to vector<64x128xf32>
    %16 = arith.maximumf %14, %15 : vector<64x128xf32>
    %17 = arith.truncf %16 : vector<64x128xf32> to vector<64x128xbf16>
    %c0_12 = arith.constant 0 : index
    %c0_13 = arith.constant 0 : index
    %18 = vector.load %arg6[%c0_12, %c0_13] : memref<128x128xbf16, #tpu.memory_space<vmem>>, vector<128x128xbf16>
    %c0_14 = arith.constant 0 : index
    %c0_15 = arith.constant 0 : index
    %19 = vector.load %arg7[%c0_14, %c0_15] : memref<1x128xf32, #tpu.memory_space<vmem>>, vector<1x128xf32>
    %cst_16 = arith.constant dense<0.000000e+00> : vector<64x128xf32>
    %20 = tpu.matmul %17, %18, %cst_16 {dimension_numbers = #tpu.dot_dimension_numbers<[1], [0], [0], [1], [0, 0, 1, 1], [], []>} : vector<64x128xbf16>, vector<128x128xbf16>, vector<64x128xf32> -> vector<64x128xf32>
    %21 = vector.broadcast %19 : vector<1x128xf32> to vector<64x128xf32>
    %22 = arith.addf %20, %21 : vector<64x128xf32>
    %cst_17 = arith.constant 0.000000e+00 : f32
    %23 = vector.broadcast %cst_17 : f32 to vector<64x128xf32>
    %24 = arith.maximumf %22, %23 : vector<64x128xf32>
    %25 = arith.truncf %24 : vector<64x128xf32> to vector<64x128xbf16>
    %c0_18 = arith.constant 0 : index
    %c0_19 = arith.constant 0 : index
    %26 = vector.load %arg8[%c0_18, %c0_19] : memref<128x128xbf16, #tpu.memory_space<vmem>>, vector<128x128xbf16>
    %c0_20 = arith.constant 0 : index
    %c0_21 = arith.constant 0 : index
    %27 = vector.load %arg9[%c0_20, %c0_21] : memref<1x128xf32, #tpu.memory_space<vmem>>, vector<1x128xf32>
    %cst_22 = arith.constant dense<0.000000e+00> : vector<64x128xf32>
    %28 = tpu.matmul %25, %26, %cst_22 {dimension_numbers = #tpu.dot_dimension_numbers<[1], [0], [0], [1], [0, 0, 1, 1], [], []>} : vector<64x128xbf16>, vector<128x128xbf16>, vector<64x128xf32> -> vector<64x128xf32>
    %29 = vector.broadcast %27 : vector<1x128xf32> to vector<64x128xf32>
    %30 = arith.addf %28, %29 : vector<64x128xf32>
    %31 = arith.truncf %30 : vector<64x128xf32> to vector<64x128xbf16>
    %c0_23 = arith.constant 0 : index
    %c0_24 = arith.constant 0 : index
    %32 = vector.load %arg10[%c0_23, %c0_24] : memref<64x128xbf16, #tpu.memory_space<vmem>>, vector<64x128xbf16>
    tpu.vector_store %arg10[%c0_23, %c0_24], %31 {strides = array<i32>} : memref<64x128xbf16, #tpu.memory_space<vmem>>, vector<64x128xbf16>,
    return
  }
  func.func @transform_0(%arg0: i32) -> (i32, i32) {
    %c0_i32 = arith.constant 0 : i32
    %c0_i32_0 = arith.constant 0 : i32
    return %arg0, %c0_i32 : i32, i32
  }
  func.func @transform_1(%arg0: i32) -> (i32, i32) {
    %c0_i32 = arith.constant 0 : i32
    %c0_i32_0 = arith.constant 0 : i32
    %c0_i32_1 = arith.constant 0 : i32
    return %c0_i32, %c0_i32_0 : i32, i32
  }
  func.func @transform_2(%arg0: i32) -> (i32, i32) {
    %c0_i32 = arith.constant 0 : i32
    %c0_i32_0 = arith.constant 0 : i32
    %c0_i32_1 = arith.constant 0 : i32
    return %c0_i32, %c0_i32_0 : i32, i32
  }
  func.func @transform_3(%arg0: i32) -> (i32, i32) {
    %c0_i32 = arith.constant 0 : i32
    %c0_i32_0 = arith.constant 0 : i32
    %c0_i32_1 = arith.constant 0 : i32
    return %c0_i32, %c0_i32_0 : i32, i32
  }
  func.func @transform_4(%arg0: i32) -> (i32, i32) {
    %c0_i32 = arith.constant 0 : i32
    %c0_i32_0 = arith.constant 0 : i32
    %c0_i32_1 = arith.constant 0 : i32
    return %c0_i32, %c0_i32_0 : i32, i32
  }
  func.func @transform_5(%arg0: i32) -> (i32, i32) {
    %c0_i32 = arith.constant 0 : i32
    %c0_i32_0 = arith.constant 0 : i32
    %c0_i32_1 = arith.constant 0 : i32
    return %c0_i32, %c0_i32_0 : i32, i32
  }
  func.func @transform_6(%arg0: i32) -> (i32, i32) {
    %c0_i32 = arith.constant 0 : i32
    %c0_i32_0 = arith.constant 0 : i32
    %c0_i32_1 = arith.constant 0 : i32
    return %c0_i32, %c0_i32_0 : i32, i32
  }
  func.func @transform_7(%arg0: i32) -> (i32, i32) {
    %c0_i32 = arith.constant 0 : i32
    %c0_i32_0 = arith.constant 0 : i32
    %c0_i32_1 = arith.constant 0 : i32
    return %c0_i32, %c0_i32_0 : i32, i32
  }
  func.func @transform_8(%arg0: i32) -> (i32, i32) {
    %c0_i32 = arith.constant 0 : i32
    %c0_i32_0 = arith.constant 0 : i32
    %c0_i32_1 = arith.constant 0 : i32
    return %c0_i32, %c0_i32_0 : i32, i32
  }
  func.func @transform_9(%arg0: i32) -> (i32, i32) {
    %c0_i32 = arith.constant 0 : i32
    %c0_i32_0 = arith.constant 0 : i32
    return %arg0, %c0_i32 : i32, i32
  }
}

</mosaic_0001>

<llo_original>
// kernel: tpu_custom_call.1
$region0: #{tpu_custom_call.1}
  #allocation0 [shape = 'u32[]', space=smem, size = 0x4, offset = 0x4, fixed_abs, tag = 'smem constant byte address 0x4 - core index']
  #allocation1 [shape = 'u32[144,128]{1,0:T(1,128)}', space=vmem, size = 0x12000, scoped, tag = 'internal scratch']
  %s0 = inlined_call_operand.vmem [shape: f32[64,32], index: 0, kind: input, shape index: {}]
  %s1 = inlined_call_operand.vmem [shape: bf16[32,128], index: 1, kind: input, shape index: {}]
  %s2 = inlined_call_operand.vmem [shape: f32[1,128], index: 2, kind: input, shape index: {}]
  %s3 = inlined_call_operand.vmem [shape: bf16[128,128], index: 3, kind: input, shape index: {}]
  %s4 = inlined_call_operand.vmem [shape: f32[1,128], index: 4, kind: input, shape index: {}]
  %s5 = inlined_call_operand.hbm [shape: bf16[128,128], index: 5, kind: input, shape index: {}]
  %s6 = inlined_call_operand.vmem [shape: f32[1,128], index: 6, kind: input, shape index: {}]
  %s7 = inlined_call_operand.hbm [shape: bf16[128,128], index: 7, kind: input, shape index: {}]
  %s8 = inlined_call_operand.vmem [shape: f32[1,128], index: 8, kind: input, shape index: {}]
  %s9 = inlined_call_operand.hbm [shape: bf16[64,128], index: 9, kind: output, shape index: {}]
  %s10 = sld [smem:[#allocation0]]
  $region54: #{tpu_custom_call.1} parent=0
    _
  %s12 = ssub.s32 1, %s10
  %s13 = scalar_select 0, %s12, %s10
  $region1: #{tpu_custom_call.1} parent=0
    #allocation2 [shape = 'u8[32768]{0}', space=vmem, size = 0x8000, scoped, tag = 'input window, operand 5, single buffered']
    #allocation3 [shape = 's32[1]{0}', space=sflag, size = 0x4, scoped, tag = 'scoped memory for tpu_custom_call.1']
    #allocation4 [shape = 's32[1]{0}', space=sflag, size = 0x4, scoped, tag = 'scoped memory for tpu_custom_call.1']
    #allocation5 [shape = 'u8[32768]{0}', space=vmem, size = 0x8000, scoped, tag = 'input window, operand 7, single buffered']
    #allocation6 [shape = 's32[1]{0}', space=sflag, size = 0x4, scoped, tag = 'scoped memory for tpu_custom_call.1']
    #allocation7 [shape = 'u8[16384]{0}', space=vmem, size = 0x4000, scoped, tag = 'output window, operand 0, single buffered']
    %14 = vsyncpa [#allocation3], 0
    %15 = vsyncpa [#allocation6], 0
    %16 = vsyncpa [#allocation4], 0
    // Predicated region
    $region2: #{tpu_custom_call.1} parent=1 // pred_check
      _
    $region3: #{tpu_custom_call.1} parent=1 // pred_check_branch
      %18 = sbr.rel (0) target = $region5
    $region4: #{tpu_custom_call.1} parent=1 // pred_region
      _
    $region5: #{tpu_custom_call.1} parent=1 // pred_fallthru
      _
    // Predicated region
    $region6: #{tpu_custom_call.1} parent=1 // pred_check
      _
    $region7: #{tpu_custom_call.1} parent=1 // pred_check_branch
      %20 = sbr.rel (0) target = $region9
    $region8: #{tpu_custom_call.1} parent=1 // pred_region
      _
    $region9: #{tpu_custom_call.1} parent=1 // pred_fallthru
      _
    // Predicated region
    $region10: #{tpu_custom_call.1} parent=1 // pred_check
      _
    $region11: #{tpu_custom_call.1} parent=1 // pred_check_branch
      %22 = sbr.rel (0) target = $region13
    $region12: #{tpu_custom_call.1} parent=1 // pred_region
      _
    $region13: #{tpu_custom_call.1} parent=1 // pred_fallthru
      _
    // Predicated region
    $region14: #{tpu_custom_call.1} parent=1 // pred_check
      _
    $region15: #{tpu_custom_call.1} parent=1 // pred_check_branch
      %24 = sbr.rel (0) target = $region17
    $region16: #{tpu_custom_call.1} parent=1 // pred_region
      _
    $region17: #{tpu_custom_call.1} parent=1 // pred_fallthru
      _
    // Predicated region
    $region18: #{tpu_custom_call.1} parent=1 // pred_check
      _
    $region19: #{tpu_custom_call.1} parent=1 // pred_check_branch
      %26 = sbr.rel (0) target = $region21
    $region20: #{tpu_custom_call.1} parent=1 // pred_region
      _
    $region21: #{tpu_custom_call.1} parent=1 // pred_fallthru
      _
    // Predicated region
    $region22: #{tpu_custom_call.1} parent=1 // pred_check
      _
    $region23: #{tpu_custom_call.1} parent=1 // pred_check_branch
      %28 = sbr.rel (0) target = $region25
    $region24: #{tpu_custom_call.1} parent=1 // pred_region
      %s30 = ssub.s32 1024, 1024
      %31 = vsyncadd [#allocation3], %s30
      %s32 = sshll.u32 [#allocation2], 4
      %s33 = int_to_ptr.vmem [resolvable:$true] %s32
      %38 = dma.hbm_to_vmem [thread:$0]  %s5, 1024, %s33, [#allocation3], 64, 64, 4
    $region25: #{tpu_custom_call.1} parent=1 // pred_fallthru
      _
    // Predicated region
    $region26: #{tpu_custom_call.1} parent=1 // pred_check
      _
    $region27: #{tpu_custom_call.1} parent=1 // pred_check_branch
      %40 = sbr.rel (0) target = $region29
    $region28: #{tpu_custom_call.1} parent=1 // pred_region
      _
    $region29: #{tpu_custom_call.1} parent=1 // pred_fallthru
      _
    // Predicated region
    $region30: #{tpu_custom_call.1} parent=1 // pred_check
      _
    $region31: #{tpu_custom_call.1} parent=1 // pred_check_branch
      %42 = sbr.rel (0) target = $region33
    $region32: #{tpu_custom_call.1} parent=1 // pred_region
      %s44 = ssub.s32 1024, 1024
      %45 = vsyncadd [#allocation6], %s44
      %s46 = sshll.u32 [#allocation5], 4
      %s47 = int_to_ptr.vmem [resolvable:$true] %s46
      %52 = dma.hbm_to_vmem [thread:$0]  %s7, 1024, %s47, [#allocation6], 64, 64, 4
    $region33: #{tpu_custom_call.1} parent=1 // pred_fallthru
      _
    // Predicated region
    $region34: #{tpu_custom_call.1} parent=1 // pred_check
      _
    $region35: #{tpu_custom_call.1} parent=1 // pred_check_branch
      %54 = sbr.rel (0) target = $region37
    $region36: #{tpu_custom_call.1} parent=1 // pred_region
      _
    $region37: #{tpu_custom_call.1} parent=1 // pred_fallthru
      _
    // Predicated region
    $region38: #{tpu_custom_call.1} parent=1 // pred_check
      _
    $region39: #{tpu_custom_call.1} parent=1 // pred_check_branch
      %56 = sbr.rel (0) target = $region41
    $region40: #{tpu_custom_call.1} parent=1 // pred_region
      %57 = dma.done [#allocation3], 1024
    $region41: #{tpu_custom_call.1} parent=1 // pred_fallthru
      _
    // Predicated region
    $region42: #{tpu_custom_call.1} parent=1 // pred_check
      _
    $region43: #{tpu_custom_call.1} parent=1 // pred_check_branch
      %59 = sbr.rel (0) target = $region45
    $region44: #{tpu_custom_call.1} parent=1 // pred_region
      %60 = dma.done [#allocation6], 1024
    $region45: #{tpu_custom_call.1} parent=1 // pred_fallthru
      _
    %v62 = vld [vmem:[%s0] sm:$0xff]
    %v63 = vld [vmem:[%s0 + $0x8] sm:$0xff]
    %v64 = vld [vmem:[%s0 + $0x10] sm:$0xff]
    %v65 = vld [vmem:[%s0 + $0x18] sm:$0xff]
    %v66 = vld [vmem:[%s0 + $0x20] sm:$0xff]
    %v67 = vld [vmem:[%s0 + $0x28] sm:$0xff]
    %v68 = vld [vmem:[%s0 + $0x30] sm:$0xff]
    %v69 = vld [vmem:[%s0 + $0x38] sm:$0xff]
    %v70 = vpack.c.bf16 %v63, %v62
    %v71 = vpack.c.bf16 %v65, %v64
    %v72 = vpack.c.bf16 %v67, %v66
    %v73 = vpack.c.bf16 %v69, %v68
    %v74 = vld [vmem:[%s1] sm:$0xf]
    %v75 = vld [vmem:[%s1 + $0x4] sm:$0xf]
    %v76 = vld [vmem:[%s1 + $0x8] sm:$0xf]
    %v77 = vld [vmem:[%s1 + $0xc] sm:$0xf]
    %v78 = vld [vmem:[%s2] sm:$0x1]
    %v80 = vlaneseq
    %v81 = vshrl.u32 %v80, 7
    %v82 = vsub.s32 0, %v81
    %v83 = vrot.slane %v78, %v82
    %v89 = vunpack.c.l.b16 %v74
    %v90 = vunpack.c.l.b16 %v75
    %v91 = vunpack.c.l.b16 %v76
    %v92 = vunpack.c.l.b16 %v77
    %v93 = vpack.c.b16 %v90, %v89
    %v94 = vpack.c.b16 %v92, %v91
    %vm97 = vcmask 261120
    %v99 = vsel %vm97, %v70, 0
    %v102 = vsel %vm97, %v71, 0
    %v105 = vsel %vm97, %v72, 0
    %v108 = vsel %vm97, %v73, 0
    %110 = vmatprep.subr.bf16.mxu0 0
    %111 = vmatpush1.bf16.msra.mxu0 %v93
    %112 = vmatprep.subr.bf16.mxu0 0
    %113 = vmatpush1.bf16.msra.mxu0 %v94
    %114 = vmatprep.subr.bf16.mxu0 0
    %115 = vmatpush1.bf16.msra.mxu0 0
    %116 = vmatprep.subr.bf16.mxu0 0
    %117 = vmatpush1.bf16.msra.mxu0 0
    %118 = vmatprep.subr.bf16.mxu0 0
    %119 = vmatpush1.bf16.msra.mxu0 0
    %120 = vmatprep.subr.bf16.mxu0 0
    %121 = vmatpush1.bf16.msra.mxu0 0
    %122 = vmatprep.subr.bf16.mxu0 0
    %123 = vmatpush1.bf16.msra.mxu0 0
    %124 = vmatprep.subr.bf16.mxu0 0
    %125 = vmatpush1.bf16.msra.mxu0 0
    %126 = vmatprep.subr.bf16.mxu0 0
    %127 = vmatpush1.bf16.msra.mxu0 0
    %128 = vmatprep.subr.bf16.mxu0 0
    %129 = vmatpush1.bf16.msra.mxu0 0
    %130 = vmatprep.subr.bf16.mxu0 0
    %131 = vmatpush1.bf16.msra.mxu0 0
    %132 = vmatprep.subr.bf16.mxu0 0
    %133 = vmatpush1.bf16.msra.mxu0 0
    %134 = vmatprep.subr.bf16.mxu0 0
    %135 = vmatpush1.bf16.msra.mxu0 0
    %136 = vmatprep.subr.bf16.mxu0 0
    %137 = vmatpush1.bf16.msra.mxu0 0
    %138 = vmatprep.subr.bf16.mxu0 0
    %139 = vmatpush1.bf16.msra.mxu0 0
    %140 = vmatprep.subr.bf16.mxu0 0
    %141 = vmatpush1.bf16.msra.mxu0 0
    %142 = vmatprep.mubr.bf16.mxu0 0
    %143 = vmatmul.mubr.bf16.gmra.mrb[0].mxu0 %v99
    %v144 = vpop.f32.mrb[0].mxu0
    %v145 = vadd.f32 %v83, %v144
    %v146 = vpop.f32.mrb[0].mxu0
    %v147 = vpop.f32.mrb[0].mxu0
    %v148 = vadd.f32 %v83, %v147
    %v149 = vpop.f32.mrb[0].mxu0
    %150 = vmatprep.mubr.bf16.mxu0 0
    %151 = vmatmul.mubr.bf16.gmra.mrb[0].mxu0 %v102
    %v152 = vpop.f32.mrb[0].mxu0
    %v153 = vadd.f32 %v83, %v152
    %v154 = vpop.f32.mrb[0].mxu0
    %v155 = vpop.f32.mrb[0].mxu0
    %v156 = vadd.f32 %v83, %v155
    %v157 = vpop.f32.mrb[0].mxu0
    %158 = vmatprep.mubr.bf16.mxu0 0
    %159 = vmatmul.mubr.bf16.gmra.mrb[0].mxu0 %v105
    %v160 = vpop.f32.mrb[0].mxu0
    %v161 = vadd.f32 %v83, %v160
    %v162 = vpop.f32.mrb[0].mxu0
    %v163 = vpop.f32.mrb[0].mxu0
    %v164 = vadd.f32 %v83, %v163
    %v165 = vpop.f32.mrb[0].mxu0
    %166 = vmatprep.mubr.bf16.mxu0 0
    %167 = vmatmul.mubr.bf16.gmra.mrb[0].mxu0 %v108
    %v168 = vpop.f32.mrb[0].mxu0
    %v169 = vadd.f32 %v83, %v168
    %v170 = vpop.f32.mrb[0].mxu0
    %v171 = vpop.f32.mrb[0].mxu0
    %v172 = vadd.f32 %v83, %v171
    %v173 = vpop.f32.mrb[0].mxu0
    %174 = vdwg.mxu0
    %v175 = vmax.f32 %v145, 0.0
    %v176 = vmax.f32 %v148, 0.0
    %v177 = vmax.f32 %v153, 0.0
    %v178 = vmax.f32 %v156, 0.0
    %v179 = vmax.f32 %v161, 0.0
    %v180 = vmax.f32 %v164, 0.0
    %v181 = vmax.f32 %v169, 0.0
    %v182 = vmax.f32 %v172, 0.0
    %v183 = vpack.c.bf16 %v176, %v175
    %v184 = vpack.c.bf16 %v178, %v177
    %v185 = vpack.c.bf16 %v180, %v179
    %v186 = vpack.c.bf16 %v182, %v181
    %v187 = vld [vmem:[%s3] sm:$0xf]
    %v188 = vld [vmem:[%s3 + $0x4] sm:$0xf]
    %v189 = vld [vmem:[%s3 + $0x8] sm:$0xf]
    %v190 = vld [vmem:[%s3 + $0xc] sm:$0xf]
    %v191 = vld [vmem:[%s3 + $0x10] sm:$0xf]
    %v192 = vld [vmem:[%s3 + $0x14] sm:$0xf]
    %v193 = vld [vmem:[%s3 + $0x18] sm:$0xf]
    %v194 = vld [vmem:[%s3 + $0x1c] sm:$0xf]
    %v195 = vld [vmem:[%s3 + $0x20] sm:$0xf]
    %v196 = vld [vmem:[%s3 + $0x24] sm:$0xf]
    %v197 = vld [vmem:[%s3 + $0x28] sm:$0xf]
    %v198 = vld [vmem:[%s3 + $0x2c] sm:$0xf]
    %v199 = vld [vmem:[%s3 + $0x30] sm:$0xf]
    %v200 = vld [vmem:[%s3 + $0x34] sm:$0xf]
    %v201 = vld [vmem:[%s3 + $0x38] sm:$0xf]
    %v202 = vld [vmem:[%s3 + $0x3c] sm:$0xf]
    %v203 = vld [vmem:[%s4] sm:$0x1]
    %v205 = vlaneseq
    %v206 = vshrl.u32 %v205, 7
    %v207 = vsub.s32 0, %v206
    %v208 = vrot.slane %v203, %v207
    %v226 = vunpack.c.l.b16 %v187
    %v227 = vunpack.c.l.b16 %v188
    %v228 = vunpack.c.l.b16 %v189
    %v229 = vunpack.c.l.b16 %v190
    %v230 = vunpack.c.l.b16 %v191
    %v231 = vunpack.c.l.b16 %v192
    %v232 = vunpack.c.l.b16 %v193
    %v233 = vunpack.c.l.b16 %v194
    %v234 = vunpack.c.l.b16 %v195
    %v235 = vunpack.c.l.b16 %v196
    %v236 = vunpack.c.l.b16 %v197
    %v237 = vunpack.c.l.b16 %v198
    %v238 = vunpack.c.l.b16 %v199
    %v239 = vunpack.c.l.b16 %v200
    %v240 = vunpack.c.l.b16 %v201
    %v241 = vunpack.c.l.b16 %v202
    %v242 = vpack.c.b16 %v227, %v226
    %v243 = vpack.c.b16 %v229, %v228
    %v244 = vpack.c.b16 %v231, %v230
    %v245 = vpack.c.b16 %v233, %v232
    %v246 = vpack.c.b16 %v235, %v234
    %v247 = vpack.c.b16 %v237, %v236
    %v248 = vpack.c.b16 %v239, %v238
    %v249 = vpack.c.b16 %v241, %v240
    %258 = vmatprep.subr.bf16.mxu0 0
    %259 = vmatpush1.bf16.msra.mxu0 %v242
    %260 = vmatprep.subr.bf16.mxu0 0
    %261 = vmatpush1.bf16.msra.mxu0 %v243
    %262 = vmatprep.subr.bf16.mxu0 0
    %263 = vmatpush1.bf16.msra.mxu0 %v244
    %264 = vmatprep.subr.bf16.mxu0 0
    %265 = vmatpush1.bf16.msra.mxu0 %v245
    %266 = vmatprep.subr.bf16.mxu0 0
    %267 = vmatpush1.bf16.msra.mxu0 %v246
    %268 = vmatprep.subr.bf16.mxu0 0
    %269 = vmatpush1.bf16.msra.mxu0 %v247
    %270 = vmatprep.subr.bf16.mxu0 0
    %271 = vmatpush1.bf16.msra.mxu0 %v248
    %272 = vmatprep.subr.bf16.mxu0 0
    %273 = vmatpush1.bf16.msra.mxu0 %v249
    %274 = vmatprep.subr.bf16.mxu0 0
    %275 = vmatpush1.bf16.msra.mxu0 0
    %276 = vmatprep.subr.bf16.mxu0 0
    %277 = vmatpush1.bf16.msra.mxu0 0
    %278 = vmatprep.subr.bf16.mxu0 0
    %279 = vmatpush1.bf16.msra.mxu0 0
    %280 = vmatprep.subr.bf16.mxu0 0
    %281 = vmatpush1.bf16.msra.mxu0 0
    %282 = vmatprep.subr.bf16.mxu0 0
    %283 = vmatpush1.bf16.msra.mxu0 0
    %284 = vmatprep.subr.bf16.mxu0 0
    %285 = vmatpush1.bf16.msra.mxu0 0
    %286 = vmatprep.subr.bf16.mxu0 0
    %287 = vmatpush1.bf16.msra.mxu0 0
    %288 = vmatprep.subr.bf16.mxu0 0
    %289 = vmatpush1.bf16.msra.mxu0 0
    %290 = vmatprep.mubr.bf16.mxu0 0
    %291 = vmatmul.mubr.bf16.gmra.mrb[0].mxu0 %v183
    %v292 = vpop.f32.mrb[0].mxu0
    %v293 = vadd.f32 %v208, %v292
    %v294 = vpop.f32.mrb[0].mxu0
    %v295 = vpop.f32.mrb[0].mxu0
    %v296 = vadd.f32 %v208, %v295
    %v297 = vpop.f32.mrb[0].mxu0
    %298 = vmatprep.mubr.bf16.mxu0 0
    %299 = vmatmul.mubr.bf16.gmra.mrb[0].mxu0 %v184
    %v300 = vpop.f32.mrb[0].mxu0
    %v301 = vadd.f32 %v208, %v300
    %v302 = vpop.f32.mrb[0].mxu0
    %v303 = vpop.f32.mrb[0].mxu0
    %v304 = vadd.f32 %v208, %v303
    %v305 = vpop.f32.mrb[0].mxu0
    %306 = vmatprep.mubr.bf16.mxu0 0
    %307 = vmatmul.mubr.bf16.gmra.mrb[0].mxu0 %v185
    %v308 = vpop.f32.mrb[0].mxu0
    %v309 = vadd.f32 %v208, %v308
    %v310 = vpop.f32.mrb[0].mxu0
    %v311 = vpop.f32.mrb[0].mxu0
    %v312 = vadd.f32 %v208, %v311
    %v313 = vpop.f32.mrb[0].mxu0
    %314 = vmatprep.mubr.bf16.mxu0 0
    %315 = vmatmul.mubr.bf16.gmra.mrb[0].mxu0 %v186
    %v316 = vpop.f32.mrb[0].mxu0
    %v317 = vadd.f32 %v208, %v316
    %v318 = vpop.f32.mrb[0].mxu0
    %v319 = vpop.f32.mrb[0].mxu0
    %v320 = vadd.f32 %v208, %v319
    %v321 = vpop.f32.mrb[0].mxu0
    %322 = vdwg.mxu0
    %v323 = vmax.f32 %v293, 0.0
    %v324 = vmax.f32 %v296, 0.0
    %v325 = vmax.f32 %v301, 0.0
    %v326 = vmax.f32 %v304, 0.0
    %v327 = vmax.f32 %v309, 0.0
    %v328 = vmax.f32 %v312, 0.0
    %v329 = vmax.f32 %v317, 0.0
    %v330 = vmax.f32 %v320, 0.0
    %v331 = vpack.c.bf16 %v324, %v323
    %v332 = vpack.c.bf16 %v326, %v325
    %v333 = vpack.c.bf16 %v328, %v327
    %v334 = vpack.c.bf16 %v330, %v329
    %v335 = vld [vmem:[#allocation2] sm:$0xf]
    %v336 = vld [vmem:[#allocation2 + $0x4] sm:$0xf]
    %v337 = vld [vmem:[#allocation2 + $0x8] sm:$0xf]
    %v338 = vld [vmem:[#allocation2 + $0xc] sm:$0xf]
    %v339 = vld [vmem:[#allocation2 + $0x10] sm:$0xf]
    %v340 = vld [vmem:[#allocation2 + $0x14] sm:$0xf]
    %v341 = vld [vmem:[#allocation2 + $0x18] sm:$0xf]
    %v342 = vld [vmem:[#allocation2 + $0x1c] sm:$0xf]
    %v343 = vld [vmem:[#allocation2 + $0x20] sm:$0xf]
    %v344 = vld [vmem:[#allocation2 + $0x24] sm:$0xf]
    %v345 = vld [vmem:[#allocation2 + $0x28] sm:$0xf]
    %v346 = vld [vmem:[#allocation2 + $0x2c] sm:$0xf]
    %v347 = vld [vmem:[#allocation2 + $0x30] sm:$0xf]
    %v348 = vld [vmem:[#allocation2 + $0x34] sm:$0xf]
    %v349 = vld [vmem:[#allocation2 + $0x38] sm:$0xf]
    %v350 = vld [vmem:[#allocation2 + $0x3c] sm:$0xf]
    %v351 = vld [vmem:[%s6] sm:$0x1]
    %v353 = vlaneseq
    %v354 = vshrl.u32 %v353, 7
    %v355 = vsub.s32 0, %v354
    %v356 = vrot.slane %v351, %v355
    %v374 = vunpack.c.l.b16 %v335
    %v375 = vunpack.c.l.b16 %v336
    %v376 = vunpack.c.l.b16 %v337
    %v377 = vunpack.c.l.b16 %v338
    %v378 = vunpack.c.l.b16 %v339
    %v379 = vunpack.c.l.b16 %v340
    %v380 = vunpack.c.l.b16 %v341
    %v381 = vunpack.c.l.b16 %v342
    %v382 = vunpack.c.l.b16 %v343
    %v383 = vunpack.c.l.b16 %v344
    %v384 = vunpack.c.l.b16 %v345
    %v385 = vunpack.c.l.b16 %v346
    %v386 = vunpack.c.l.b16 %v347
    %v387 = vunpack.c.l.b16 %v348
    %v388 = vunpack.c.l.b16 %v349
    %v389 = vunpack.c.l.b16 %v350
    %v390 = vpack.c.b16 %v375, %v374
    %v391 = vpack.c.b16 %v377, %v376
    %v392 = vpack.c.b16 %v379, %v378
    %v393 = vpack.c.b16 %v381, %v380
    %v394 = vpack.c.b16 %v383, %v382
    %v395 = vpack.c.b16 %v385, %v384
    %v396 = vpack.c.b16 %v387, %v386
    %v397 = vpack.c.b16 %v389, %v388
    %406 = vmatprep.subr.bf16.mxu0 0
    %407 = vmatpush1.bf16.msra.mxu0 %v390
    %408 = vmatprep.subr.bf16.mxu0 0
    %409 = vmatpush1.bf16.msra.mxu0 %v391
    %410 = vmatprep.subr.bf16.mxu0 0
    %411 = vmatpush1.bf16.msra.mxu0 %v392
    %412 = vmatprep.subr.bf16.mxu0 0
    %413 = vmatpush1.bf16.msra.mxu0 %v393
    %414 = vmatprep.subr.bf16.mxu0 0
    %415 = vmatpush1.bf16.msra.mxu0 %v394
    %416 = vmatprep.subr.bf16.mxu0 0
    %417 = vmatpush1.bf16.msra.mxu0 %v395
    %418 = vmatprep.subr.bf16.mxu0 0
    %419 = vmatpush1.bf16.msra.mxu0 %v396
    %420 = vmatprep.subr.bf16.mxu0 0
    %421 = vmatpush1.bf16.msra.mxu0 %v397
    %422 = vmatprep.subr.bf16.mxu0 0
    %423 = vmatpush1.bf16.msra.mxu0 0
    %424 = vmatprep.subr.bf16.mxu0 0
    %425 = vmatpush1.bf16.msra.mxu0 0
    %426 = vmatprep.subr.bf16.mxu0 0
    %427 = vmatpush1.bf16.msra.mxu0 0
    %428 = vmatprep.subr.bf16.mxu0 0
    %429 = vmatpush1.bf16.msra.mxu0 0
    %430 = vmatprep.subr.bf16.mxu0 0
    %431 = vmatpush1.bf16.msra.mxu0 0
    %432 = vmatprep.subr.bf16.mxu0 0
    %433 = vmatpush1.bf16.msra.mxu0 0
    %434 = vmatprep.subr.bf16.mxu0 0
    %435 = vmatpush1.bf16.msra.mxu0 0
    %436 = vmatprep.subr.bf16.mxu0 0
    %437 = vmatpush1.bf16.msra.mxu0 0
    %438 = vmatprep.mubr.bf16.mxu0 0
    %439 = vmatmul.mubr.bf16.gmra.mrb[0].mxu0 %v331
    %v440 = vpop.f32.mrb[0].mxu0
    %v441 = vadd.f32 %v356, %v440
    %v442 = vpop.f32.mrb[0].mxu0
    %v443 = vpop.f32.mrb[0].mxu0
    %v444 = vadd.f32 %v356, %v443
    %v445 = vpop.f32.mrb[0].mxu0
    %446 = vmatprep.mubr.bf16.mxu0 0
    %447 = vmatmul.mubr.bf16.gmra.mrb[0].mxu0 %v332
    %v448 = vpop.f32.mrb[0].mxu0
    %v449 = vadd.f32 %v356, %v448
    %v450 = vpop.f32.mrb[0].mxu0
    %v451 = vpop.f32.mrb[0].mxu0
    %v452 = vadd.f32 %v356, %v451
    %v453 = vpop.f32.mrb[0].mxu0
    %454 = vmatprep.mubr.bf16.mxu0 0
    %455 = vmatmul.mubr.bf16.gmra.mrb[0].mxu0 %v333
    %v456 = vpop.f32.mrb[0].mxu0
    %v457 = vadd.f32 %v356, %v456
    %v458 = vpop.f32.mrb[0].mxu0
    %v459 = vpop.f32.mrb[0].mxu0
    %v460 = vadd.f32 %v356, %v459
    %v461 = vpop.f32.mrb[0].mxu0
    %462 = vmatprep.mubr.bf16.mxu0 0
    %463 = vmatmul.mubr.bf16.gmra.mrb[0].mxu0 %v334
    %v464 = vpop.f32.mrb[0].mxu0
    %v465 = vadd.f32 %v356, %v464
    %v466 = vpop.f32.mrb[0].mxu0
    %v467 = vpop.f32.mrb[0].mxu0
    %v468 = vadd.f32 %v356, %v467
    %v469 = vpop.f32.mrb[0].mxu0
    %470 = vdwg.mxu0
    %v471 = vmax.f32 %v441, 0.0
    %v472 = vmax.f32 %v444, 0.0
    %v473 = vmax.f32 %v449, 0.0
    %v474 = vmax.f32 %v452, 0.0
    %v475 = vmax.f32 %v457, 0.0
    %v476 = vmax.f32 %v460, 0.0
    %v477 = vmax.f32 %v465, 0.0
    %v478 = vmax.f32 %v468, 0.0
    %v479 = vpack.c.bf16 %v472, %v471
    %v480 = vpack.c.bf16 %v474, %v473
    %v481 = vpack.c.bf16 %v476, %v475
    %v482 = vpack.c.bf16 %v478, %v477
    %v483 = vld [vmem:[#allocation5] sm:$0xf]
    %v484 = vld [vmem:[#allocation5 + $0x4] sm:$0xf]
    %v485 = vld [vmem:[#allocation5 + $0x8] sm:$0xf]
    %v486 = vld [vmem:[#allocation5 + $0xc] sm:$0xf]
    %v487 = vld [vmem:[#allocation5 + $0x10] sm:$0xf]
    %v488 = vld [vmem:[#allocation5 + $0x14] sm:$0xf]
    %v489 = vld [vmem:[#allocation5 + $0x18] sm:$0xf]
    %v490 = vld [vmem:[#allocation5 + $0x1c] sm:$0xf]
    %v491 = vld [vmem:[#allocation5 + $0x20] sm:$0xf]
    %v492 = vld [vmem:[#allocation5 + $0x24] sm:$0xf]
    %v493 = vld [vmem:[#allocation5 + $0x28] sm:$0xf]
    %v494 = vld [vmem:[#allocation5 + $0x2c] sm:$0xf]
    %v495 = vld [vmem:[#allocation5 + $0x30] sm:$0xf]
    %v496 = vld [vmem:[#allocation5 + $0x34] sm:$0xf]
    %v497 = vld [vmem:[#allocation5 + $0x38] sm:$0xf]
    %v498 = vld [vmem:[#allocation5 + $0x3c] sm:$0xf]
    %v499 = vld [vmem:[%s8] sm:$0x1]
    %v501 = vlaneseq
    %v502 = vshrl.u32 %v501, 7
    %v503 = vsub.s32 0, %v502
    %v504 = vrot.slane %v499, %v503
    %v522 = vunpack.c.l.b16 %v483
    %v523 = vunpack.c.l.b16 %v484
    %v524 = vunpack.c.l.b16 %v485
    %v525 = vunpack.c.l.b16 %v486
    %v526 = vunpack.c.l.b16 %v487
    %v527 = vunpack.c.l.b16 %v488
    %v528 = vunpack.c.l.b16 %v489
    %v529 = vunpack.c.l.b16 %v490
    %v530 = vunpack.c.l.b16 %v491
    %v531 = vunpack.c.l.b16 %v492
    %v532 = vunpack.c.l.b16 %v493
    %v533 = vunpack.c.l.b16 %v494
    %v534 = vunpack.c.l.b16 %v495
    %v535 = vunpack.c.l.b16 %v496
    %v536 = vunpack.c.l.b16 %v497
    %v537 = vunpack.c.l.b16 %v498
    %v538 = vpack.c.b16 %v523, %v522
    %v539 = vpack.c.b16 %v525, %v524
    %v540 = vpack.c.b16 %v527, %v526
    %v541 = vpack.c.b16 %v529, %v528
    %v542 = vpack.c.b16 %v531, %v530
    %v543 = vpack.c.b16 %v533, %v532
    %v544 = vpack.c.b16 %v535, %v534
    %v545 = vpack.c.b16 %v537, %v536
    %554 = vmatprep.subr.bf16.mxu0 0
    %555 = vmatpush1.bf16.msra.mxu0 %v538
    %556 = vmatprep.subr.bf16.mxu0 0
    %557 = vmatpush1.bf16.msra.mxu0 %v539
    %558 = vmatprep.subr.bf16.mxu0 0
    %559 = vmatpush1.bf16.msra.mxu0 %v540
    %560 = vmatprep.subr.bf16.mxu0 0
    %561 = vmatpush1.bf16.msra.mxu0 %v541
    %562 = vmatprep.subr.bf16.mxu0 0
    %563 = vmatpush1.bf16.msra.mxu0 %v542
    %564 = vmatprep.subr.bf16.mxu0 0
    %565 = vmatpush1.bf16.msra.mxu0 %v543
    %566 = vmatprep.subr.bf16.mxu0 0
    %567 = vmatpush1.bf16.msra.mxu0 %v544
    %568 = vmatprep.subr.bf16.mxu0 0
    %569 = vmatpush1.bf16.msra.mxu0 %v545
    %570 = vmatprep.subr.bf16.mxu0 0
    %571 = vmatpush1.bf16.msra.mxu0 0
    %572 = vmatprep.subr.bf16.mxu0 0
    %573 = vmatpush1.bf16.msra.mxu0 0
    %574 = vmatprep.subr.bf16.mxu0 0
    %575 = vmatpush1.bf16.msra.mxu0 0
    %576 = vmatprep.subr.bf16.mxu0 0
    %577 = vmatpush1.bf16.msra.mxu0 0
    %578 = vmatprep.subr.bf16.mxu0 0
    %579 = vmatpush1.bf16.msra.mxu0 0
    %580 = vmatprep.subr.bf16.mxu0 0
    %581 = vmatpush1.bf16.msra.mxu0 0
    %582 = vmatprep.subr.bf16.mxu0 0
    %583 = vmatpush1.bf16.msra.mxu0 0
    %584 = vmatprep.subr.bf16.mxu0 0
    %585 = vmatpush1.bf16.msra.mxu0 0
    %586 = vmatprep.mubr.bf16.mxu0 0
    %587 = vmatmul.mubr.bf16.gmra.mrb[0].mxu0 %v479
    %v588 = vpop.f32.mrb[0].mxu0
    %v589 = vadd.f32 %v504, %v588
    %v590 = vpop.f32.mrb[0].mxu0
    %v591 = vpop.f32.mrb[0].mxu0
    %v592 = vadd.f32 %v504, %v591
    %v593 = vpop.f32.mrb[0].mxu0
    %594 = vmatprep.mubr.bf16.mxu0 0
    %595 = vmatmul.mubr.bf16.gmra.mrb[0].mxu0 %v480
    %v596 = vpop.f32.mrb[0].mxu0
    %v597 = vadd.f32 %v504, %v596
    %v598 = vpop.f32.mrb[0].mxu0
    %v599 = vpop.f32.mrb[0].mxu0
    %v600 = vadd.f32 %v504, %v599
    %v601 = vpop.f32.mrb[0].mxu0
    %602 = vmatprep.mubr.bf16.mxu0 0
    %603 = vmatmul.mubr.bf16.gmra.mrb[0].mxu0 %v481
    %v604 = vpop.f32.mrb[0].mxu0
    %v605 = vadd.f32 %v504, %v604
    %v606 = vpop.f32.mrb[0].mxu0
    %v607 = vpop.f32.mrb[0].mxu0
    %v608 = vadd.f32 %v504, %v607
    %v609 = vpop.f32.mrb[0].mxu0
    %610 = vmatprep.mubr.bf16.mxu0 0
    %611 = vmatmul.mubr.bf16.gmra.mrb[0].mxu0 %v482
    %v612 = vpop.f32.mrb[0].mxu0
    %v613 = vadd.f32 %v504, %v612
    %v614 = vpop.f32.mrb[0].mxu0
    %v615 = vpop.f32.mrb[0].mxu0
    %v616 = vadd.f32 %v504, %v615
    %v617 = vpop.f32.mrb[0].mxu0
    %618 = vdwg.mxu0
    %v619 = vpack.c.bf16 %v592, %v589
    %v620 = vpack.c.bf16 %v600, %v597
    %v621 = vpack.c.bf16 %v608, %v605
    %v622 = vpack.c.bf16 %v616, %v613
    %v627 = vunpack.c.l.b16 %v619
    %v628 = vunpack.c.h.b16 %v619
    %v629 = vunpack.c.l.b16 %v620
    %v630 = vunpack.c.h.b16 %v620
    %v631 = vunpack.c.l.b16 %v621
    %v632 = vunpack.c.h.b16 %v621
    %v633 = vunpack.c.l.b16 %v622
    %v634 = vunpack.c.h.b16 %v622
    %v635 = vpack.c.b16 %v627, %v627
    %v636 = vpack.c.b16 %v628, %v628
    %v637 = vpack.c.b16 %v629, %v629
    %v638 = vpack.c.b16 %v630, %v630
    %v639 = vpack.c.b16 %v631, %v631
    %v640 = vpack.c.b16 %v632, %v632
    %v641 = vpack.c.b16 %v633, %v633
    %v642 = vpack.c.b16 %v634, %v634
    %651 = vst [vmem:[#allocation7] sm:$0xf] %v635
    %652 = vst [vmem:[#allocation7 + $0x4] sm:$0xf] %v636
    %653 = vst [vmem:[#allocation7 + $0x8] sm:$0xf] %v637
    %654 = vst [vmem:[#allocation7 + $0xc] sm:$0xf] %v638
    %655 = vst [vmem:[#allocation7 + $0x10] sm:$0xf] %v639
    %656 = vst [vmem:[#allocation7 + $0x14] sm:$0xf] %v640
    %657 = vst [vmem:[#allocation7 + $0x18] sm:$0xf] %v641
    %658 = vst [vmem:[#allocation7 + $0x1c] sm:$0xf] %v642
    // Predicated region
    $region46: #{tpu_custom_call.1} parent=1 // pred_check
      _
    $region47: #{tpu_custom_call.1} parent=1 // pred_check_branch
      %660 = sbr.rel (0) target = $region49
    $region48: #{tpu_custom_call.1} parent=1 // pred_region
      %s662 = ssub.s32 512, 512
      %663 = vsyncadd [#allocation4], %s662
      %s664 = sshll.u32 [#allocation7], 4
      %s665 = int_to_ptr.vmem [resolvable:$true] %s664
      %670 = dma.vmem_to_hbm [thread:$0]  %s665, 512, %s9, [#allocation4], 64, 64, 4
    $region49: #{tpu_custom_call.1} parent=1 // pred_fallthru
      _
    // Predicated region
    $region50: #{tpu_custom_call.1} parent=1 // pred_check
      _
    $region51: #{tpu_custom_call.1} parent=1 // pred_check_branch
      %672 = sbr.rel (0) target = $region53
    $region52: #{tpu_custom_call.1} parent=1 // pred_region
      %673 = dma.done [#allocation4], 512
    $region53: #{tpu_custom_call.1} parent=1 // pred_fallthru
      _
    %674 = vsyncpa [#allocation3], 1
    %675 = vsyncpa [#allocation6], 1
    %676 = vsyncpa [#allocation4], 1

// kernel: tpu_custom_call.1
$region0: #{tpu_custom_call.1}
  #allocation0 [shape = 'u32[]', space=smem, size = 0x4, offset = 0x4, fixed_abs, tag = 'smem constant byte address 0x4 - core index']
  #allocation1 [shape = 'u32[144,128]{1,0:T(1,128)}', space=vmem, size = 0x12000, scoped, tag = 'internal scratch']
  %s0 = inlined_call_operand.vmem [shape: f32[64,32], index: 0, kind: input, shape index: {}]
  %s1 = inlined_call_operand.vmem [shape: bf16[32,128], index: 1, kind: input, shape index: {}]
  %s2 = inlined_call_operand.vmem [shape: f32[1,128], index: 2, kind: input, shape index: {}]
  %s3 = inlined_call_operand.vmem [shape: bf16[128,128], index: 3, kind: input, shape index: {}]
  %s4 = inlined_call_operand.vmem [shape: f32[1,128], index: 4, kind: input, shape index: {}]
  %s5 = inlined_call_operand.hbm [shape: bf16[128,128], index: 5, kind: input, shape index: {}]
  %s6 = inlined_call_operand.vmem [shape: f32[1,128], index: 6, kind: input, shape index: {}]
  %s7 = inlined_call_operand.hbm [shape: bf16[128,128], index: 7, kind: input, shape index: {}]
  %s8 = inlined_call_operand.vmem [shape: f32[1,128], index: 8, kind: input, shape index: {}]
  %s9 = inlined_call_operand.hbm [shape: bf16[64,128], index: 9, kind: output, shape index: {}]
  %s10 = sld [smem:[#allocation0]]
  $region54: #{tpu_custom_call.1} parent=0
    _
  %s12 = ssub.s32 1, %s10
  %s13 = scalar_select 0, %s12, %s10
  $region1: #{tpu_custom_call.1} parent=0
    #allocation2 [shape = 'u8[32768]{0}', space=vmem, size = 0x8000, scoped, tag = 'input window, operand 5, single buffered']
    #allocation3 [shape = 's32[1]{0}', space=sflag, size = 0x4, scoped, tag = 'scoped memory for tpu_custom_call.1']
    #allocation4 [shape = 's32[1]{0}', space=sflag, size = 0x4, scoped, tag = 'scoped memory for tpu_custom_call.1']
    #allocation5 [shape = 'u8[32768]{0}', space=vmem, size = 0x8000, scoped, tag = 'input window, operand 7, single buffered']
    #allocation6 [shape = 's32[1]{0}', space=sflag, size = 0x4, scoped, tag = 'scoped memory for tpu_custom_call.1']
    #allocation7 [shape = 'u8[16384]{0}', space=vmem, size = 0x4000, scoped, tag = 'output window, operand 0, single buffered']
    %14 = vsyncpa [#allocation3], 0
    %15 = vsyncpa [#allocation6], 0
    %16 = vsyncpa [#allocation4], 0
    // Predicated region
    $region2: #{tpu_custom_call.1} parent=1 // pred_check
      _
    $region3: #{tpu_custom_call.1} parent=1 // pred_check_branch
      %18 = sbr.rel (0) target = $region5
    $region4: #{tpu_custom_call.1} parent=1 // pred_region
      _
    $region5: #{tpu_custom_call.1} parent=1 // pred_fallthru
      _
    // Predicated region
    $region6: #{tpu_custom_call.1} parent=1 // pred_check
      _
    $region7: #{tpu_custom_call.1} parent=1 // pred_check_branch
      %20 = sbr.rel (0) target = $region9
    $region8: #{tpu_custom_call.1} parent=1 // pred_region
      _
    $region9: #{tpu_custom_call.1} parent=1 // pred_fallthru
      _
    // Predicated region
    $region10: #{tpu_custom_call.1} parent=1 // pred_check
      _
    $region11: #{tpu_custom_call.1} parent=1 // pred_check_branch
      %22 = sbr.rel (0) target = $region13
    $region12: #{tpu_custom_call.1} parent=1 // pred_region
      _
    $region13: #{tpu_custom_call.1} parent=1 // pred_fallthru
      _
    // Predicated region
    $region14: #{tpu_custom_call.1} parent=1 // pred_check
      _
    $region15: #{tpu_custom_call.1} parent=1 // pred_check_branch
      %24 = sbr.rel (0) target = $region17
    $region16: #{tpu_custom_call.1} parent=1 // pred_region
      _
    $region17: #{tpu_custom_call.1} parent=1 // pred_fallthru
      _
    // Predicated region
    $region18: #{tpu_custom_call.1} parent=1 // pred_check
      _
    $region19: #{tpu_custom_call.1} parent=1 // pred_check_branch
      %26 = sbr.rel (0) target = $region21
    $region20: #{tpu_custom_call.1} parent=1 // pred_region
      _
    $region21: #{tpu_custom_call.1} parent=1 // pred_fallthru
      _
    // Predicated region
    $region22: #{tpu_custom_call.1} parent=1 // pred_check
      _
    $region23: #{tpu_custom_call.1} parent=1 // pred_check_branch
      %28 = sbr.rel (0) target = $region25
    $region24: #{tpu_custom_call.1} parent=1 // pred_region
      %s30 = ssub.s32 1024, 1024
      %31 = vsyncadd [#allocation3], %s30
      %s32 = sshll.u32 [#allocation2], 4
      %s33 = int_to_ptr.vmem [resolvable:$true] %s32
      %38 = dma.hbm_to_vmem [thread:$0]  %s5, 1024, %s33, [#allocation3], 64, 64, 4
    $region25: #{tpu_custom_call.1} parent=1 // pred_fallthru
      _
    // Predicated region
    $region26: #{tpu_custom_call.1} parent=1 // pred_check
      _
    $region27: #{tpu_custom_call.1} parent=1 // pred_check_branch
      %40 = sbr.rel (0) target = $region29
    $region28: #{tpu_custom_call.1} parent=1 // pred_region
      _
    $region29: #{tpu_custom_call.1} parent=1 // pred_fallthru
      _
    // Predicated region
    $region30: #{tpu_custom_call.1} parent=1 // pred_check
      _
    $region31: #{tpu_custom_call.1} parent=1 // pred_check_branch
      %42 = sbr.rel (0) target = $region33
    $region32: #{tpu_custom_call.1} parent=1 // pred_region
      %s44 = ssub.s32 1024, 1024
      %45 = vsyncadd [#allocation6], %s44
      %s46 = sshll.u32 [#allocation5], 4
      %s47 = int_to_ptr.vmem [resolvable:$true] %s46
      %52 = dma.hbm_to_vmem [thread:$0]  %s7, 1024, %s47, [#allocation6], 64, 64, 4
    $region33: #{tpu_custom_call.1} parent=1 // pred_fallthru
      _
    // Predicated region
    $region34: #{tpu_custom_call.1} parent=1 // pred_check
      _
    $region35: #{tpu_custom_call.1} parent=1 // pred_check_branch
      %54 = sbr.rel (0) target = $region37
    $region36: #{tpu_custom_call.1} parent=1 // pred_region
      _
    $region37: #{tpu_custom_call.1} parent=1 // pred_fallthru
      _
    // Predicated region
    $region38: #{tpu_custom_call.1} parent=1 // pred_check
      _
    $region39: #{tpu_custom_call.1} parent=1 // pred_check_branch
      %56 = sbr.rel (0) target = $region41
    $region40: #{tpu_custom_call.1} parent=1 // pred_region
      %57 = dma.done [#allocation3], 1024
    $region41: #{tpu_custom_call.1} parent=1 // pred_fallthru
      _
    // Predicated region
    $region42: #{tpu_custom_call.1} parent=1 // pred_check
      _
    $region43: #{tpu_custom_call.1} parent=1 // pred_check_branch
      %59 = sbr.rel (0) target = $region45
    $region44: #{tpu_custom_call.1} parent=1 // pred_region
      %60 = dma.done [#allocation6], 1024
    $region45: #{tpu_custom_call.1} parent=1 // pred_fallthru
      _
    %v62 = vld [vmem:[%s0] sm:$0xff]
    %v63 = vld [vmem:[%s0 + $0x8] sm:$0xff]
    %v64 = vld [vmem:[%s0 + $0x10] sm:$0xff]
    %v65 = vld [vmem:[%s0 + $0x18] sm:$0xff]
    %v66 = vld [vmem:[%s0 + $0x20] sm:$0xff]
    %v67 = vld [vmem:[%s0 + $0x28] sm:$0xff]
    %v68 = vld [vmem:[%s0 + $0x30] sm:$0xff]
    %v69 = vld [vmem:[%s0 + $0x38] sm:$0xff]
    %v70 = vpack.c.bf16 %v63, %v62
    %v71 = vpack.c.bf16 %v65, %v64
    %v72 = vpack.c.bf16 %v67, %v66
    %v73 = vpack.c.bf16 %v69, %v68
    %v74 = vld [vmem:[%s1] sm:$0xf]
    %v75 = vld [vmem:[%s1 + $0x4] sm:$0xf]
    %v76 = vld [vmem:[%s1 + $0x8] sm:$0xf]
    %v77 = vld [vmem:[%s1 + $0xc] sm:$0xf]
    %v78 = vld [vmem:[%s2] sm:$0x1]
    %v80 = vlaneseq
    %v81 = vshrl.u32 %v80, 7
    %v82 = vsub.s32 0, %v81
    %v83 = vrot.slane %v78, %v82
    %v89 = vunpack.c.l.b16 %v74
    %v90 = vunpack.c.l.b16 %v75
    %v91 = vunpack.c.l.b16 %v76
    %v92 = vunpack.c.l.b16 %v77
    %v93 = vpack.c.b16 %v90, %v89
    %v94 = vpack.c.b16 %v92, %v91
    %vm97 = vcmask 261120
    %v99 = vsel %vm97, %v70, 0
    %v102 = vsel %vm97, %v71, 0
    %v105 = vsel %vm97, %v72, 0
    %v108 = vsel %vm97, %v73, 0
    %110 = vmatprep.subr.bf16.mxu0 0
    %111 = vmatpush1.bf16.msra.mxu0 %v93
    %112 = vmatprep.subr.bf16.mxu0 0
    %113 = vmatpush1.bf16.msra.mxu0 %v94
    %114 = vmatprep.subr.bf16.mxu0 0
    %115 = vmatpush1.bf16.msra.mxu0 0
    %116 = vmatprep.subr.bf16.mxu0 0
    %117 = vmatpush1.bf16.msra.mxu0 0
    %118 = vmatprep.subr.bf16.mxu0 0
    %119 = vmatpush1.bf16.msra.mxu0 0
    %120 = vmatprep.subr.bf16.mxu0 0
    %121 = vmatpush1.bf16.msra.mxu0 0
    %122 = vmatprep.subr.bf16.mxu0 0
    %123 = vmatpush1.bf16.msra.mxu0 0
    %124 = vmatprep.subr.bf16.mxu0 0
    %125 = vmatpush1.bf16.msra.mxu0 0
    %126 = vmatprep.subr.bf16.mxu0 0
    %127 = vmatpush1.bf16.msra.mxu0 0
    %128 = vmatprep.subr.bf16.mxu0 0
    %129 = vmatpush1.bf16.msra.mxu0 0
    %130 = vmatprep.subr.bf16.mxu0 0
    %131 = vmatpush1.bf16.msra.mxu0 0
    %132 = vmatprep.subr.bf16.mxu0 0
    %133 = vmatpush1.bf16.msra.mxu0 0
    %134 = vmatprep.subr.bf16.mxu0 0
    %135 = vmatpush1.bf16.msra.mxu0 0
    %136 = vmatprep.subr.bf16.mxu0 0
    %137 = vmatpush1.bf16.msra.mxu0 0
    %138 = vmatprep.subr.bf16.mxu0 0
    %139 = vmatpush1.bf16.msra.mxu0 0
    %140 = vmatprep.subr.bf16.mxu0 0
    %141 = vmatpush1.bf16.msra.mxu0 0
    %142 = vmatprep.mubr.bf16.mxu0 0
    %143 = vmatmul.mubr.bf16.gmra.mrb[0].mxu0 %v99
    %v144 = vpop.f32.mrb[0].mxu0
    %v145 = vadd.f32 %v83, %v144
    %v146 = vpop.f32.mrb[0].mxu0
    %v147 = vpop.f32.mrb[0].mxu0
    %v148 = vadd.f32 %v83, %v147
    %v149 = vpop.f32.mrb[0].mxu0
    %150 = vmatprep.mubr.bf16.mxu0 0
    %151 = vmatmul.mubr.bf16.gmra.mrb[0].mxu0 %v102
    %v152 = vpop.f32.mrb[0].mxu0
    %v153 = vadd.f32 %v83, %v152
    %v154 = vpop.f32.mrb[0].mxu0
    %v155 = vpop.f32.mrb[0].mxu0
    %v156 = vadd.f32 %v83, %v155
    %v157 = vpop.f32.mrb[0].mxu0
    %158 = vmatprep.mubr.bf16.mxu0 0
    %159 = vmatmul.mubr.bf16.gmra.mrb[0].mxu0 %v105
    %v160 = vpop.f32.mrb[0].mxu0
    %v161 = vadd.f32 %v83, %v160
    %v162 = vpop.f32.mrb[0].mxu0
    %v163 = vpop.f32.mrb[0].mxu0
    %v164 = vadd.f32 %v83, %v163
    %v165 = vpop.f32.mrb[0].mxu0
    %166 = vmatprep.mubr.bf16.mxu0 0
    %167 = vmatmul.mubr.bf16.gmra.mrb[0].mxu0 %v108
    %v168 = vpop.f32.mrb[0].mxu0
    %v169 = vadd.f32 %v83, %v168
    %v170 = vpop.f32.mrb[0].mxu0
    %v171 = vpop.f32.mrb[0].mxu0
    %v172 = vadd.f32 %v83, %v171
    %v173 = vpop.f32.mrb[0].mxu0
    %174 = vdwg.mxu0
    %v175 = vmax.f32 %v145, 0.0
    %v176 = vmax.f32 %v148, 0.0
    %v177 = vmax.f32 %v153, 0.0
    %v178 = vmax.f32 %v156, 0.0
    %v179 = vmax.f32 %v161, 0.0
    %v180 = vmax.f32 %v164, 0.0
    %v181 = vmax.f32 %v169, 0.0
    %v182 = vmax.f32 %v172, 0.0
    %v183 = vpack.c.bf16 %v176, %v175
    %v184 = vpack.c.bf16 %v178, %v177
    %v185 = vpack.c.bf16 %v180, %v179
    %v186 = vpack.c.bf16 %v182, %v181
    %v187 = vld [vmem:[%s3] sm:$0xf]
    %v188 = vld [vmem:[%s3 + $0x4] sm:$0xf]
    %v189 = vld [vmem:[%s3 + $0x8] sm:$0xf]
    %v190 = vld [vmem:[%s3 + $0xc] sm:$0xf]
    %v191 = vld [vmem:[%s3 + $0x10] sm:$0xf]
    %v192 = vld [vmem:[%s3 + $0x14] sm:$0xf]
    %v193 = vld [vmem:[%s3 + $0x18] sm:$0xf]
    %v194 = vld [vmem:[%s3 + $0x1c] sm:$0xf]
    %v195 = vld [vmem:[%s3 + $0x20] sm:$0xf]
    %v196 = vld [vmem:[%s3 + $0x24] sm:$0xf]
    %v197 = vld [vmem:[%s3 + $0x28] sm:$0xf]
    %v198 = vld [vmem:[%s3 + $0x2c] sm:$0xf]
    %v199 = vld [vmem:[%s3 + $0x30] sm:$0xf]
    %v200 = vld [vmem:[%s3 + $0x34] sm:$0xf]
    %v201 = vld [vmem:[%s3 + $0x38] sm:$0xf]
    %v202 = vld [vmem:[%s3 + $0x3c] sm:$0xf]
    %v203 = vld [vmem:[%s4] sm:$0x1]
    %v205 = vlaneseq
    %v206 = vshrl.u32 %v205, 7
    %v207 = vsub.s32 0, %v206
    %v208 = vrot.slane %v203, %v207
    %v226 = vunpack.c.l.b16 %v187
    %v227 = vunpack.c.l.b16 %v188
    %v228 = vunpack.c.l.b16 %v189
    %v229 = vunpack.c.l.b16 %v190
    %v230 = vunpack.c.l.b16 %v191
    %v231 = vunpack.c.l.b16 %v192
    %v232 = vunpack.c.l.b16 %v193
    %v233 = vunpack.c.l.b16 %v194
    %v234 = vunpack.c.l.b16 %v195
    %v235 = vunpack.c.l.b16 %v196
    %v236 = vunpack.c.l.b16 %v197
    %v237 = vunpack.c.l.b16 %v198
    %v238 = vunpack.c.l.b16 %v199
    %v239 = vunpack.c.l.b16 %v200
    %v240 = vunpack.c.l.b16 %v201
    %v241 = vunpack.c.l.b16 %v202
    %v242 = vpack.c.b16 %v227, %v226
    %v243 = vpack.c.b16 %v229, %v228
    %v244 = vpack.c.b16 %v231, %v230
    %v245 = vpack.c.b16 %v233, %v232
    %v246 = vpack.c.b16 %v235, %v234
    %v247 = vpack.c.b16 %v237, %v236
    %v248 = vpack.c.b16 %v239, %v238
    %v249 = vpack.c.b16 %v241, %v240
    %258 = vmatprep.subr.bf16.mxu0 0
    %259 = vmatpush1.bf16.msra.mxu0 %v242
    %260 = vmatprep.subr.bf16.mxu0 0
    %261 = vmatpush1.bf16.msra.mxu0 %v243
    %262 = vmatprep.subr.bf16.mxu0 0
    %263 = vmatpush1.bf16.msra.mxu0 %v244
    %264 = vmatprep.subr.bf16.mxu0 0
    %265 = vmatpush1.bf16.msra.mxu0 %v245
    %266 = vmatprep.subr.bf16.mxu0 0
    %267 = vmatpush1.bf16.msra.mxu0 %v246
    %268 = vmatprep.subr.bf16.mxu0 0
    %269 = vmatpush1.bf16.msra.mxu0 %v247
    %270 = vmatprep.subr.bf16.mxu0 0
    %271 = vmatpush1.bf16.msra.mxu0 %v248
    %272 = vmatprep.subr.bf16.mxu0 0
    %273 = vmatpush1.bf16.msra.mxu0 %v249
    %274 = vmatprep.subr.bf16.mxu0 0
    %275 = vmatpush1.bf16.msra.mxu0 0
    %276 = vmatprep.subr.bf16.mxu0 0
    %277 = vmatpush1.bf16.msra.mxu0 0
    %278 = vmatprep.subr.bf16.mxu0 0
    %279 = vmatpush1.bf16.msra.mxu0 0
    %280 = vmatprep.subr.bf16.mxu0 0
    %281 = vmatpush1.bf16.msra.mxu0 0
    %282 = vmatprep.subr.bf16.mxu0 0
    %283 = vmatpush1.bf16.msra.mxu0 0
    %284 = vmatprep.subr.bf16.mxu0 0
    %285 = vmatpush1.bf16.msra.mxu0 0
    %286 = vmatprep.subr.bf16.mxu0 0
    %287 = vmatpush1.bf16.msra.mxu0 0
    %288 = vmatprep.subr.bf16.mxu0 0
    %289 = vmatpush1.bf16.msra.mxu0 0
    %290 = vmatprep.mubr.bf16.mxu0 0
    %291 = vmatmul.mubr.bf16.gmra.mrb[0].mxu0 %v183
    %v292 = vpop.f32.mrb[0].mxu0
    %v293 = vadd.f32 %v208, %v292
    %v294 = vpop.f32.mrb[0].mxu0
    %v295 = vpop.f32.mrb[0].mxu0
    %v296 = vadd.f32 %v208, %v295
    %v297 = vpop.f32.mrb[0].mxu0
    %298 = vmatprep.mubr.bf16.mxu0 0
    %299 = vmatmul.mubr.bf16.gmra.mrb[0].mxu0 %v184
    %v300 = vpop.f32.mrb[0].mxu0
    %v301 = vadd.f32 %v208, %v300
    %v302 = vpop.f32.mrb[0].mxu0
    %v303 = vpop.f32.mrb[0].mxu0
    %v304 = vadd.f32 %v208, %v303
    %v305 = vpop.f32.mrb[0].mxu0
    %306 = vmatprep.mubr.bf16.mxu0 0
    %307 = vmatmul.mubr.bf16.gmra.mrb[0].mxu0 %v185
    %v308 = vpop.f32.mrb[0].mxu0
    %v309 = vadd.f32 %v208, %v308
    %v310 = vpop.f32.mrb[0].mxu0
    %v311 = vpop.f32.mrb[0].mxu0
    %v312 = vadd.f32 %v208, %v311
    %v313 = vpop.f32.mrb[0].mxu0
    %314 = vmatprep.mubr.bf16.mxu0 0
    %315 = vmatmul.mubr.bf16.gmra.mrb[0].mxu0 %v186
    %v316 = vpop.f32.mrb[0].mxu0
    %v317 = vadd.f32 %v208, %v316
    %v318 = vpop.f32.mrb[0].mxu0
    %v319 = vpop.f32.mrb[0].mxu0
    %v320 = vadd.f32 %v208, %v319
    %v321 = vpop.f32.mrb[0].mxu0
    %322 = vdwg.mxu0
    %v323 = vmax.f32 %v293, 0.0
    %v324 = vmax.f32 %v296, 0.0
    %v325 = vmax.f32 %v301, 0.0
    %v326 = vmax.f32 %v304, 0.0
    %v327 = vmax.f32 %v309, 0.0
    %v328 = vmax.f32 %v312, 0.0
    %v329 = vmax.f32 %v317, 0.0
    %v330 = vmax.f32 %v320, 0.0
    %v331 = vpack.c.bf16 %v324, %v323
    %v332 = vpack.c.bf16 %v326, %v325
    %v333 = vpack.c.bf16 %v328, %v327
    %v334 = vpack.c.bf16 %v330, %v329
    %v335 = vld [vmem:[#allocation2] sm:$0xf]
    %v336 = vld [vmem:[#allocation2 + $0x4] sm:$0xf]
    %v337 = vld [vmem:[#allocation2 + $0x8] sm:$0xf]
    %v338 = vld [vmem:[#allocation2 + $0xc] sm:$0xf]
    %v339 = vld [vmem:[#allocation2 + $0x10] sm:$0xf]
    %v340 = vld [vmem:[#allocation2 + $0x14] sm:$0xf]
    %v341 = vld [vmem:[#allocation2 + $0x18] sm:$0xf]
    %v342 = vld [vmem:[#allocation2 + $0x1c] sm:$0xf]
    %v343 = vld [vmem:[#allocation2 + $0x20] sm:$0xf]
    %v344 = vld [vmem:[#allocation2 + $0x24] sm:$0xf]
    %v345 = vld [vmem:[#allocation2 + $0x28] sm:$0xf]
    %v346 = vld [vmem:[#allocation2 + $0x2c] sm:$0xf]
    %v347 = vld [vmem:[#allocation2 + $0x30] sm:$0xf]
    %v348 = vld [vmem:[#allocation2 + $0x34] sm:$0xf]
    %v349 = vld [vmem:[#allocation2 + $0x38] sm:$0xf]
    %v350 = vld [vmem:[#allocation2 + $0x3c] sm:$0xf]
    %v351 = vld [vmem:[%s6] sm:$0x1]
    %v353 = vlaneseq
    %v354 = vshrl.u32 %v353, 7
    %v355 = vsub.s32 0, %v354
    %v356 = vrot.slane %v351, %v355
    %v374 = vunpack.c.l.b16 %v335
    %v375 = vunpack.c.l.b16 %v336
    %v376 = vunpack.c.l.b16 %v337
    %v377 = vunpack.c.l.b16 %v338
    %v378 = vunpack.c.l.b16 %v339
    %v379 = vunpack.c.l.b16 %v340
    %v380 = vunpack.c.l.b16 %v341
    %v381 = vunpack.c.l.b16 %v342
    %v382 = vunpack.c.l.b16 %v343
    %v383 = vunpack.c.l.b16 %v344
    %v384 = vunpack.c.l.b16 %v345
    %v385 = vunpack.c.l.b16 %v346
    %v386 = vunpack.c.l.b16 %v347
    %v387 = vunpack.c.l.b16 %v348
    %v388 = vunpack.c.l.b16 %v349
    %v389 = vunpack.c.l.b16 %v350
    %v390 = vpack.c.b16 %v375, %v374
    %v391 = vpack.c.b16 %v377, %v376
    %v392 = vpack.c.b16 %v379, %v378
    %v393 = vpack.c.b16 %v381, %v380
    %v394 = vpack.c.b16 %v383, %v382
    %v395 = vpack.c.b16 %v385, %v384
    %v396 = vpack.c.b16 %v387, %v386
    %v397 = vpack.c.b16 %v389, %v388
    %406 = vmatprep.subr.bf16.mxu0 0
    %407 = vmatpush1.bf16.msra.mxu0 %v390
    %408 = vmatprep.subr.bf16.mxu0 0
    %409 = vmatpush1.bf16.msra.mxu0 %v391
    %410 = vmatprep.subr.bf16.mxu0 0
    %411 = vmatpush1.bf16.msra.mxu0 %v392
    %412 = vmatprep.subr.bf16.mxu0 0
    %413 = vmatpush1.bf16.msra.mxu0 %v393
    %414 = vmatprep.subr.bf16.mxu0 0
    %415 = vmatpush1.bf16.msra.mxu0 %v394
    %416 = vmatprep.subr.bf16.mxu0 0
    %417 = vmatpush1.bf16.msra.mxu0 %v395
    %418 = vmatprep.subr.bf16.mxu0 0
    %419 = vmatpush1.bf16.msra.mxu0 %v396
    %420 = vmatprep.subr.bf16.mxu0 0
    %421 = vmatpush1.bf16.msra.mxu0 %v397
    %422 = vmatprep.subr.bf16.mxu0 0
    %423 = vmatpush1.bf16.msra.mxu0 0
    %424 = vmatprep.subr.bf16.mxu0 0
    %425 = vmatpush1.bf16.msra.mxu0 0
    %426 = vmatprep.subr.bf16.mxu0 0
    %427 = vmatpush1.bf16.msra.mxu0 0
    %428 = vmatprep.subr.bf16.mxu0 0
    %429 = vmatpush1.bf16.msra.mxu0 0
    %430 = vmatprep.subr.bf16.mxu0 0
    %431 = vmatpush1.bf16.msra.mxu0 0
    %432 = vmatprep.subr.bf16.mxu0 0
    %433 = vmatpush1.bf16.msra.mxu0 0
    %434 = vmatprep.subr.bf16.mxu0 0
    %435 = vmatpush1.bf16.msra.mxu0 0
    %436 = vmatprep.subr.bf16.mxu0 0
    %437 = vmatpush1.bf16.msra.mxu0 0
    %438 = vmatprep.mubr.bf16.mxu0 0
    %439 = vmatmul.mubr.bf16.gmra.mrb[0].mxu0 %v331
    %v440 = vpop.f32.mrb[0].mxu0
    %v441 = vadd.f32 %v356, %v440
    %v442 = vpop.f32.mrb[0].mxu0
    %v443 = vpop.f32.mrb[0].mxu0
    %v444 = vadd.f32 %v356, %v443
    %v445 = vpop.f32.mrb[0].mxu0
    %446 = vmatprep.mubr.bf16.mxu0 0
    %447 = vmatmul.mubr.bf16.gmra.mrb[0].mxu0 %v332
    %v448 = vpop.f32.mrb[0].mxu0
    %v449 = vadd.f32 %v356, %v448
    %v450 = vpop.f32.mrb[0].mxu0
    %v451 = vpop.f32.mrb[0].mxu0
    %v452 = vadd.f32 %v356, %v451
    %v453 = vpop.f32.mrb[0].mxu0
    %454 = vmatprep.mubr.bf16.mxu0 0
    %455 = vmatmul.mubr.bf16.gmra.mrb[0].mxu0 %v333
    %v456 = vpop.f32.mrb[0].mxu0
    %v457 = vadd.f32 %v356, %v456
    %v458 = vpop.f32.mrb[0].mxu0
    %v459 = vpop.f32.mrb[0].mxu0
    %v460 = vadd.f32 %v356, %v459
    %v461 = vpop.f32.mrb[0].mxu0
    %462 = vmatprep.mubr.bf16.mxu0 0
    %463 = vmatmul.mubr.bf16.gmra.mrb[0].mxu0 %v334
    %v464 = vpop.f32.mrb[0].mxu0
    %v465 = vadd.f32 %v356, %v464
    %v466 = vpop.f32.mrb[0].mxu0
    %v467 = vpop.f32.mrb[0].mxu0
    %v468 = vadd.f32 %v356, %v467
    %v469 = vpop.f32.mrb[0].mxu0
    %470 = vdwg.mxu0
    %v471 = vmax.f32 %v441, 0.0
    %v472 = vmax.f32 %v444, 0.0
    %v473 = vmax.f32 %v449, 0.0
    %v474 = vmax.f32 %v452, 0.0
    %v475 = vmax.f32 %v457, 0.0
    %v476 = vmax.f32 %v460, 0.0
    %v477 = vmax.f32 %v465, 0.0
    %v478 = vmax.f32 %v468, 0.0
    %v479 = vpack.c.bf16 %v472, %v471
    %v480 = vpack.c.bf16 %v474, %v473
    %v481 = vpack.c.bf16 %v476, %v475
    %v482 = vpack.c.bf16 %v478, %v477
    %v483 = vld [vmem:[#allocation5] sm:$0xf]
    %v484 = vld [vmem:[#allocation5 + $0x4] sm:$0xf]
    %v485 = vld [vmem:[#allocation5 + $0x8] sm:$0xf]
    %v486 = vld [vmem:[#allocation5 + $0xc] sm:$0xf]
    %v487 = vld [vmem:[#allocation5 + $0x10] sm:$0xf]
    %v488 = vld [vmem:[#allocation5 + $0x14] sm:$0xf]
    %v489 = vld [vmem:[#allocation5 + $0x18] sm:$0xf]
    %v490 = vld [vmem:[#allocation5 + $0x1c] sm:$0xf]
    %v491 = vld [vmem:[#allocation5 + $0x20] sm:$0xf]
    %v492 = vld [vmem:[#allocation5 + $0x24] sm:$0xf]
    %v493 = vld [vmem:[#allocation5 + $0x28] sm:$0xf]
    %v494 = vld [vmem:[#allocation5 + $0x2c] sm:$0xf]
    %v495 = vld [vmem:[#allocation5 + $0x30] sm:$0xf]
    %v496 = vld [vmem:[#allocation5 + $0x34] sm:$0xf]
    %v497 = vld [vmem:[#allocation5 + $0x38] sm:$0xf]
    %v498 = vld [vmem:[#allocation5 + $0x3c] sm:$0xf]
    %v499 = vld [vmem:[%s8] sm:$0x1]
    %v501 = vlaneseq
    %v502 = vshrl.u32 %v501, 7
    %v503 = vsub.s32 0, %v502
    %v504 = vrot.slane %v499, %v503
    %v522 = vunpack.c.l.b16 %v483
    %v523 = vunpack.c.l.b16 %v484
    %v524 = vunpack.c.l.b16 %v485
    %v525 = vunpack.c.l.b16 %v486
    %v526 = vunpack.c.l.b16 %v487
    %v527 = vunpack.c.l.b16 %v488
    %v528 = vunpack.c.l.b16 %v489
    %v529 = vunpack.c.l.b16 %v490
    %v530 = vunpack.c.l.b16 %v491
    %v531 = vunpack.c.l.b16 %v492
    %v532 = vunpack.c.l.b16 %v493
    %v533 = vunpack.c.l.b16 %v494
    %v534 = vunpack.c.l.b16 %v495
    %v535 = vunpack.c.l.b16 %v496
    %v536 = vunpack.c.l.b16 %v497
    %v537 = vunpack.c.l.b16 %v498
    %v538 = vpack.c.b16 %v523, %v522
    %v539 = vpack.c.b16 %v525, %v524
    %v540 = vpack.c.b16 %v527, %v526
    %v541 = vpack.c.b16 %v529, %v528
    %v542 = vpack.c.b16 %v531, %v530
    %v543 = vpack.c.b16 %v533, %v532
    %v544 = vpack.c.b16 %v535, %v534
    %v545 = vpack.c.b16 %v537, %v536
    %554 = vmatprep.subr.bf16.mxu0 0
    %555 = vmatpush1.bf16.msra.mxu0 %v538
    %556 = vmatprep.subr.bf16.mxu0 0
    %557 = vmatpush1.bf16.msra.mxu0 %v539
    %558 = vmatprep.subr.bf16.mxu0 0
    %559 = vmatpush1.bf16.msra.mxu0 %v540
    %560 = vmatprep.subr.bf16.mxu0 0
    %561 = vmatpush1.bf16.msra.mxu0 %v541
    %562 = vmatprep.subr.bf16.mxu0 0
    %563 = vmatpush1.bf16.msra.mxu0 %v542
    %564 = vmatprep.subr.bf16.mxu0 0
    %565 = vmatpush1.bf16.msra.mxu0 %v543
    %566 = vmatprep.subr.bf16.mxu0 0
    %567 = vmatpush1.bf16.msra.mxu0 %v544
    %568 = vmatprep.subr.bf16.mxu0 0
    %569 = vmatpush1.bf16.msra.mxu0 %v545
    %570 = vmatprep.subr.bf16.mxu0 0
    %571 = vmatpush1.bf16.msra.mxu0 0
    %572 = vmatprep.subr.bf16.mxu0 0
    %573 = vmatpush1.bf16.msra.mxu0 0
    %574 = vmatprep.subr.bf16.mxu0 0
    %575 = vmatpush1.bf16.msra.mxu0 0
    %576 = vmatprep.subr.bf16.mxu0 0
    %577 = vmatpush1.bf16.msra.mxu0 0
    %578 = vmatprep.subr.bf16.mxu0 0
    %579 = vmatpush1.bf16.msra.mxu0 0
    %580 = vmatprep.subr.bf16.mxu0 0
    %581 = vmatpush1.bf16.msra.mxu0 0
    %582 = vmatprep.subr.bf16.mxu0 0
    %583 = vmatpush1.bf16.msra.mxu0 0
    %584 = vmatprep.subr.bf16.mxu0 0
    %585 = vmatpush1.bf16.msra.mxu0 0
    %586 = vmatprep.mubr.bf16.mxu0 0
    %587 = vmatmul.mubr.bf16.gmra.mrb[0].mxu0 %v479
    %v588 = vpop.f32.mrb[0].mxu0
    %v589 = vadd.f32 %v504, %v588
    %v590 = vpop.f32.mrb[0].mxu0
    %v591 = vpop.f32.mrb[0].mxu0
    %v592 = vadd.f32 %v504, %v591
    %v593 = vpop.f32.mrb[0].mxu0
    %594 = vmatprep.mubr.bf16.mxu0 0
    %595 = vmatmul.mubr.bf16.gmra.mrb[0].mxu0 %v480
    %v596 = vpop.f32.mrb[0].mxu0
    %v597 = vadd.f32 %v504, %v596
    %v598 = vpop.f32.mrb[0].mxu0
    %v599 = vpop.f32.mrb[0].mxu0
    %v600 = vadd.f32 %v504, %v599
    %v601 = vpop.f32.mrb[0].mxu0
    %602 = vmatprep.mubr.bf16.mxu0 0
    %603 = vmatmul.mubr.bf16.gmra.mrb[0].mxu0 %v481
    %v604 = vpop.f32.mrb[0].mxu0
    %v605 = vadd.f32 %v504, %v604
    %v606 = vpop.f32.mrb[0].mxu0
    %v607 = vpop.f32.mrb[0].mxu0
    %v608 = vadd.f32 %v504, %v607
    %v609 = vpop.f32.mrb[0].mxu0
    %610 = vmatprep.mubr.bf16.mxu0 0
    %611 = vmatmul.mubr.bf16.gmra.mrb[0].mxu0 %v482
    %v612 = vpop.f32.mrb[0].mxu0
    %v613 = vadd.f32 %v504, %v612
    %v614 = vpop.f32.mrb[0].mxu0
    %v615 = vpop.f32.mrb[0].mxu0
    %v616 = vadd.f32 %v504, %v615
    %v617 = vpop.f32.mrb[0].mxu0
    %618 = vdwg.mxu0
    %v619 = vpack.c.bf16 %v592, %v589
    %v620 = vpack.c.bf16 %v600, %v597
    %v621 = vpack.c.bf16 %v608, %v605
    %v622 = vpack.c.bf16 %v616, %v613
    %v627 = vunpack.c.l.b16 %v619
    %v628 = vunpack.c.h.b16 %v619
    %v629 = vunpack.c.l.b16 %v620
    %v630 = vunpack.c.h.b16 %v620
    %v631 = vunpack.c.l.b16 %v621
    %v632 = vunpack.c.h.b16 %v621
    %v633 = vunpack.c.l.b16 %v622
    %v634 = vunpack.c.h.b16 %v622
    %v635 = vpack.c.b16 %v627, %v627
    %v636 = vpack.c.b16 %v628, %v628
    %v637 = vpack.c.b16 %v629, %v629
    %v638 = vpack.c.b16 %v630, %v630
    %v639 = vpack.c.b16 %v631, %v631
    %v640 = vpack.c.b16 %v632, %v632
    %v641 = vpack.c.b16 %v633, %v633
    %v642 = vpack.c.b16 %v634, %v634
    %651 = vst [vmem:[#allocation7] sm:$0xf] %v635
    %652 = vst [vmem:[#allocation7 + $0x4] sm:$0xf] %v636
    %653 = vst [vmem:[#allocation7 + $0x8] sm:$0xf] %v637
    %654 = vst [vmem:[#allocation7 + $0xc] sm:$0xf] %v638
    %655 = vst [vmem:[#allocation7 + $0x10] sm:$0xf] %v639
    %656 = vst [vmem:[#allocation7 + $0x14] sm:$0xf] %v640
    %657 = vst [vmem:[#allocation7 + $0x18] sm:$0xf] %v641
    %658 = vst [vmem:[#allocation7 + $0x1c] sm:$0xf] %v642
    // Predicated region
    $region46: #{tpu_custom_call.1} parent=1 // pred_check
      _
    $region47: #{tpu_custom_call.1} parent=1 // pred_check_branch
      %660 = sbr.rel (0) target = $region49
    $region48: #{tpu_custom_call.1} parent=1 // pred_region
      %s662 = ssub.s32 512, 512
      %663 = vsyncadd [#allocation4], %s662
      %s664 = sshll.u32 [#allocation7], 4
      %s665 = int_to_ptr.vmem [resolvable:$true] %s664
      %670 = dma.vmem_to_hbm [thread:$0]  %s665, 512, %s9, [#allocation4], 64, 64, 4
    $region49: #{tpu_custom_call.1} parent=1 // pred_fallthru
      _
    // Predicated region
    $region50: #{tpu_custom_call.1} parent=1 // pred_check
      _
    $region51: #{tpu_custom_call.1} parent=1 // pred_check_branch
      %672 = sbr.rel (0) target = $region53
    $region52: #{tpu_custom_call.1} parent=1 // pred_region
      %673 = dma.done [#allocation4], 512
    $region53: #{tpu_custom_call.1} parent=1 // pred_fallthru
      _
    %674 = vsyncpa [#allocation3], 1
    %675 = vsyncpa [#allocation6], 1
    %676 = vsyncpa [#allocation4], 1

</llo_original>
